<compile_context>
chip_gen: v6e
topology: v6e:2x2x1
jax: 0.10.0
libtpu: 0.0.40
codegen_flags: <defaults>
</compile_context>

<pallas_src>
import functools

import jax
import jax.numpy as jnp
from jax import lax
from jax.experimental import pallas as pl
from jax.experimental.pallas import tpu as pltpu


def _round_up(v, m):
    return (v + m - 1) // m * m


def _cdiv(a, b):
    return -(-a // b)


def _pad_to(a, shape):
    pads = [(0, s - d) for d, s in zip(a.shape, shape)]
    if any(p[1] for p in pads):
        return jnp.pad(a, pads)
    return a


def _mclass_kernel(x_ref, w1a_ref, w1b_ref, s6_ref, b6_ref,
                   w2_ref, b2_ref, s7_ref, b7_ref,
                   w3_ref, b3_ref, o_ref,
                   max_acc, sum_acc,
                   *, n_points, tn, lane, n_chunks, nk, ragged):
    k = pl.program_id(1)

    # ---- init lane-dense running max / sum accumulators (once per batch tile)
    @pl.when(k == 0)
    def _init():
        max_acc[...] = jnp.full_like(max_acc, -jnp.inf)
        sum_acc[...] = jnp.zeros_like(sum_acc)

    # ---- streamed pooling: pure VPU max/add over lane-aligned slabs.
    # Masking only exists on the ragged last tile (Python-static gate) and
    # only on its partial chunk; fully-valid tiles are mask-free.
    def update(masked_tail):
        m = max_acc[...]
        s = sum_acc[...]
        for j in range(n_chunks):                     # static chunk loop
            off = j * lane
            if masked_tail:
                rem = n_points - ((nk - 1) * tn + off)  # Python-static
                if rem <= 0:
                    continue                           # whole chunk is OOB
            xj = x_ref[:, :, off:off + lane].astype(jnp.float32)
            if masked_tail and rem < lane:
                idx = lax.broadcasted_iota(jnp.int32, (1, 1, lane), 2)
                valid = idx < rem
                m = jnp.maximum(m, jnp.where(valid, xj, -jnp.inf))
                s = s + jnp.where(valid, xj, 0.0)
            else:
                m = jnp.maximum(m, xj)
                s = s + xj
        max_acc[...] = m
        sum_acc[...] = s

    if ragged:
        @pl.when(k < nk - 1)
        def _body():
            update(False)

        @pl.when(k == nk - 1)
        def _tail():
            update(True)
    else:
        update(False)

    # ---- finalize: single lane reduce + MLP head on the pooled features ----
    @pl.when(k == nk - 1)
    def _finalize():
        x1 = jnp.max(max_acc[...], axis=-1)                  # (TB, C) max-pool
        x2 = jnp.sum(sum_acc[...], axis=-1) * (1.0 / n_points)  # (TB, C) avg
        x1w = x1.astype(w1a_ref.dtype)
        x2w = x2.astype(w1b_ref.dtype)

        # linear_1 (no bias) + bn_6 + leaky_relu(0.2) + linear_2, processed in
        # 128-lane chunks of the 512-wide hidden dim to bound vreg pressure.
        hidden = w1a_ref.shape[1]
        h2 = None
        for j0 in range(0, hidden, 128):
            sl = slice(j0, min(j0 + 128, hidden))
            hj = (jnp.dot(x1w, w1a_ref[:, sl], preferred_element_type=jnp.float32)
                  + jnp.dot(x2w, w1b_ref[:, sl], preferred_element_type=jnp.float32))
            hj = hj * s6_ref[:, sl] + b6_ref[:, sl]           # bn_6 (eval, folded)
            hj = jnp.where(hj > 0, hj, 0.2 * hj)              # leaky_relu(0.2)
            # dp_1: identity in eval mode
            part = jnp.dot(hj.astype(w2_ref.dtype), w2_ref[sl, :],
                           preferred_element_type=jnp.float32)
            h2 = part if h2 is None else h2 + part

        h2 = h2 + b2_ref[...]                                 # linear_2 bias
        h2 = h2 * s7_ref[...] + b7_ref[...]                   # bn_7 (eval, folded)
        h2 = jnp.where(h2 > 0, h2, 0.2 * h2)                  # leaky_relu(0.2)
        # dp_2: identity in eval mode

        out = jnp.dot(h2.astype(w3_ref.dtype), w3_ref[...],   # linear_3 (+bias)
                      preferred_element_type=jnp.float32) + b3_ref[...]
        o_ref[...] = out.astype(o_ref.dtype)


def mclassification_forward(x, params, *, batch_tile=128, point_tile=512,
                            use_bf16=True, max_tn=None):
    """x: (B, emb_dims, N) float. Returns logits (B, output_channels).

    `max_tn` (multiple of 128) optionally caps the point tile - testing knob to
    exercise the streamed / ragged-tail path with small inputs.
    """
    B, C, N = x.shape
    out_ch = params["w3"].shape[1]
    hidden1 = params["w1"].shape[1]          # 512
    hidden2 = params["w2"].shape[1]          # 256
    OUT_PAD = _round_up(out_ch, 128)         # lane-dense output stores

    w_dtype = jnp.bfloat16 if use_bf16 else jnp.float32
    stream_dtype = jnp.bfloat16 if use_bf16 else jnp.float32
    x_isz = jnp.dtype(stream_dtype).itemsize

    # ---- weights: split w1 (avoids lane concat), pad only tiny w3/b3 ----
    w1 = params["w1"]                        # (2C, 512): [max rows; avg rows]
    w1a = w1[:C].astype(w_dtype)
    w1b = w1[C:].astype(w_dtype)
    w2 = params["w2"].astype(w_dtype)
    w3 = _pad_to(params["w3"], (hidden2, OUT_PAD)).astype(w_dtype)
    b2 = params["b2"].astype(jnp.float32)
    b3 = _pad_to(params["b3"], (1, OUT_PAD)).astype(jnp.float32)
    s6 = params["s6"].astype(jnp.float32)
    b6 = params["b6"].astype(jnp.float32)
    s7 = params["s7"].astype(jnp.float32)
    b7 = params["b7"].astype(jnp.float32)
    weights = (w1a, w1b, s6, b6, w2, b2, s7, b7, w3, b3)
    weight_bytes = sum(int(a.size) * a.dtype.itemsize for a in weights)

    # ---- generation-aware VMEM budget ----
    try:
        vmem_cap = int(pltpu.get_tpu_info().vmem_capacity_bytes)
    except Exception:
        vmem_cap = 64 * 1024 * 1024          # conservative (v7x per-TC VMEM)
    budget = int(vmem_cap * 0.6)

    # ---- batch tiling: >=2 blocks when possible so both v7x TCs engage ----
    nb = max(1, _cdiv(B, batch_tile))
    if nb == 1 and B >= 16:
        nb = 2
    TB = _cdiv(B, nb)
    if nb > 1:
        TB = _round_up(TB, 8)
    nb = _cdiv(B, TB)

    point_tile = max(128, _round_up(point_tile, 128))

    def acc_lane(tn):
        return 128 if tn % 128 == 0 else tn

    def need_bytes(tb, tn):
        ln = acc_lane(tn)
        return (2 * tb * C * tn * x_isz      # double-buffered x block
                + 2 * tb * C * ln * 4        # lane-dense max/sum accumulators
                + 2 * tb * OUT_PAD * 4       # double-buffered output block
                + 2 * weight_bytes)          # resident weights (worst case)

    def pick_tn(tb):
        cap = N if max_tn is None else max_tn
        # 1) whole point row per block: longest DMA bursts, no tail handling
        if N <= cap and (N % 128 == 0 or N <= point_tile) \
                and need_bytes(tb, N) <= budget:
            return N, False
        top = max(128, (min(point_tile, cap) // 128) * 128)
        # 2) lane-aligned tile that divides N: still no ragged tail
        for t in range(top, 127, -128):
            if t < N and N % t == 0 and need_bytes(tb, t) <= budget:
                return t, False
        # 3) ragged tail, masked in-kernel (x is never padded in HBM)
        for t in range(top, 127, -128):
            if t < N and need_bytes(tb, t) <= budget:
                return t, True
        return None, False

    TN, ragged = pick_tn(TB)
    while TN is None and TB > 8:
        TB = max(8, _round_up(TB // 2, 8))
        nb = _cdiv(B, TB)
        TN, ragged = pick_tn(TB)
    if TN is None:                           # pathological fallback
        TN = N if N <= point_tile else point_tile
        ragged = (TN != N) and (N % TN != 0)

    LANE = acc_lane(TN)
    n_chunks = TN // LANE
    nk = _cdiv(N, TN)
    B_out = nb * TB

    need = need_bytes(TB, TN)
    vmem_limit = max(32 << 20, min(int(vmem_cap * 0.9), need + (8 << 20)))

    # Stream x in bf16 (half the HBM bytes). In production, fuse this cast
    # into the producer of x so it is not a standalone HBM pass.
    x_s = x if x.dtype == stream_dtype else x.astype(stream_dtype)

    flops = 2 * B * (2 * C * hidden1 + hidden1 * hidden2 + hidden2 * out_ch) \
        + 2 * B * C * N
    bytes_acc = int(B * C * N * x_isz + weight_bytes + B_out * OUT_PAD * 4)

    kernel = functools.partial(_mclass_kernel, n_points=N, tn=TN, lane=LANE,
                               n_chunks=n_chunks, nk=nk, ragged=ragged)
    const2 = lambda i, k: (0, 0)             # weights resident across the grid

    out = pl.pallas_call(
        kernel,
        out_shape=jax.ShapeDtypeStruct((B_out, OUT_PAD), jnp.float32),
        grid=(nb, nk),
        in_specs=[
            pl.BlockSpec((TB, C, TN), lambda i, k: (i, 0, k)),   # x stream
            pl.BlockSpec((C, hidden1), const2),                  # w1a (max rows)
            pl.BlockSpec((C, hidden1), const2),                  # w1b (avg rows)
            pl.BlockSpec((1, hidden1), const2),                  # s6
            pl.BlockSpec((1, hidden1), const2),                  # b6
            pl.BlockSpec((hidden1, hidden2), const2),            # w2
            pl.BlockSpec((1, hidden2), const2),                  # b2
            pl.BlockSpec((1, hidden2), const2),                  # s7
            pl.BlockSpec((1, hidden2), const2),                  # b7
            pl.BlockSpec((hidden2, OUT_PAD), const2),            # w3
            pl.BlockSpec((1, OUT_PAD), const2),                  # b3
        ],
        out_specs=pl.BlockSpec((TB, OUT_PAD), lambda i, k: (i, 0)),
        scratch_shapes=[pltpu.VMEM((TB, C, LANE), jnp.float32),  # running max
                        pltpu.VMEM((TB, C, LANE), jnp.float32)], # running sum
        compiler_params=pltpu.CompilerParams(
            dimension_semantics=("parallel", "arbitrary"),
            vmem_limit_bytes=int(vmem_limit)),
        cost_estimate=pl.CostEstimate(flops=flops, transcendentals=0,
                                      bytes_accessed=bytes_acc),
    )(x_s, w1a, w1b, s6, b6, w2, b2, s7, b7, w3, b3)

    return out[:B, :out_ch]


def init_params(key, emb_dims=32, output_channels=40):
    """Deterministic synthetic parameters matching the PyTorch module shapes."""
    k1, k2, k3, kb2, kb3 = jax.random.split(key, 5)
    in1 = emb_dims * 2
    # Linear weights stored transposed (in, out) for row-major matmul.
    w1 = jax.random.normal(k1, (in1, 512), jnp.float32) * (1.0 / jnp.sqrt(in1))
    w2 = jax.random.normal(k2, (512, 256), jnp.float32) * (1.0 / jnp.sqrt(512))
    b2 = jax.random.normal(kb2, (1, 256), jnp.float32) * 0.01
    w3 = jax.random.normal(k3, (256, output_channels), jnp.float32) * (1.0 / jnp.sqrt(256))
    b3 = jax.random.normal(kb3, (1, output_channels), jnp.float32) * 0.01

    # BatchNorm1d (eval): fold gamma/beta/running stats into scale & shift.
    eps = 1e-5
    gamma6 = jnp.ones((1, 512), jnp.float32); beta6 = jnp.zeros((1, 512), jnp.float32)
    mean6 = jnp.zeros((1, 512), jnp.float32); var6 = jnp.ones((1, 512), jnp.float32)
    s6 = gamma6 / jnp.sqrt(var6 + eps)
    b6 = beta6 - mean6 * s6

    gamma7 = jnp.ones((1, 256), jnp.float32); beta7 = jnp.zeros((1, 256), jnp.float32)
    mean7 = jnp.zeros((1, 256), jnp.float32); var7 = jnp.ones((1, 256), jnp.float32)
    s7 = gamma7 / jnp.sqrt(var7 + eps)
    b7 = beta7 - mean7 * s7

    return {"w1": w1, "s6": s6, "b6": b6,
            "w2": w2, "b2": b2, "s7": s7, "b7": b7,
            "w3": w3, "b3": b3}


def reference_forward(x, params, *, use_bf16=True):
    """Pure-JAX reference of the PyTorch forward (eval mode), mirroring the
    kernel's bf16 streaming and bf16 matmul operands with f32 accumulation."""
    C = x.shape[1]
    w_dtype = jnp.bfloat16 if use_bf16 else jnp.float32

    def mm(a, w):
        return jnp.dot(a.astype(w_dtype), w.astype(w_dtype),
                       preferred_element_type=jnp.float32)

    xs = x.astype(w_dtype).astype(jnp.float32)
    x1 = jnp.max(xs, axis=-1)
    x2 = jnp.mean(xs, axis=-1)
    h = mm(x1, params["w1"][:C]) + mm(x2, params["w1"][C:])
    h = h * params["s6"] + params["b6"]
    h = jnp.where(h > 0, h, 0.2 * h)
    h = mm(h, params["w2"]) + params["b2"]
    h = h * params["s7"] + params["b7"]
    h = jnp.where(h > 0, h, 0.2 * h)
    return mm(h, params["w3"]) + params["b3"]


if __name__ == "__main__":
    key = jax.random.PRNGKey(0)
    kx, kx2, kp = jax.random.split(key, 3)

    batch, emb_dims, n_points, out_channels = 2, 32, 64, 40
    params = init_params(kp, emb_dims=emb_dims, output_channels=out_channels)

    # Case 1: whole point row fits in one tile (TN = N path).
    x = jax.random.normal(kx, (batch, emb_dims, n_points), jnp.float32)
    out = jax.block_until_ready(mclassification_forward(x, params))
    ref = reference_forward(x, params)
    assert out.shape == (batch, out_channels)
    assert bool(jnp.all(jnp.isfinite(out))), "non-finite output"
    assert jnp.allclose(out, ref, atol=2e-2, rtol=2e-2), "mismatch vs reference"

    # Case 2: streamed multi-tile path with a ragged (masked) last point tile:
    # N=200 with a 128-wide point tile -> nk=2, last tile 72 valid points.
    x_r = jax.random.normal(kx2, (batch, emb_dims, 200), jnp.float32)
    out_r = jax.block_until_ready(
        mclassification_forward(x_r, params, max_tn=128))
    ref_r = reference_forward(x_r, params)
    assert out_r.shape == (batch, out_channels)
    assert bool(jnp.all(jnp.isfinite(out_r))), "non-finite output (ragged)"
    assert jnp.allclose(out_r, ref_r, atol=2e-2, rtol=2e-2), "ragged mismatch"

    print("KERNEL_OK")
</pallas_src>

<mosaic_0001>
module attributes {stable_mosaic.version = 11 : i64} {
  func.func @_mclass_kernel(%arg0: i32, %arg1: i32, %arg2: memref<2x32x64xbf16, #tpu.memory_space<vmem>>, %arg3: memref<32x512xbf16, #tpu.memory_space<vmem>>, %arg4: memref<32x512xbf16, #tpu.memory_space<vmem>>, %arg5: memref<1x512xf32, #tpu.memory_space<vmem>>, %arg6: memref<1x512xf32, #tpu.memory_space<vmem>>, %arg7: memref<512x256xbf16, #tpu.memory_space<vmem>>, %arg8: memref<1x256xf32, #tpu.memory_space<vmem>>, %arg9: memref<1x256xf32, #tpu.memory_space<vmem>>, %arg10: memref<1x256xf32, #tpu.memory_space<vmem>>, %arg11: memref<256x128xbf16, #tpu.memory_space<vmem>>, %arg12: memref<1x128xf32, #tpu.memory_space<vmem>>, %arg13: memref<2x128xf32, #tpu.memory_space<vmem>>, %arg14: memref<2x32x64xf32, #tpu.memory_space<vmem>>, %arg15: memref<2x32x64xf32, #tpu.memory_space<vmem>>) attributes {dimension_semantics = [#tpu.dimension_semantics<parallel>, #tpu.dimension_semantics<arbitrary>], iteration_bounds = array<i64: 1, 1>, scalar_prefetch = 0 : i64, scratch_operands = 2 : i64, tpu.core_type = #tpu.core_type<tc>, window_params = [{transform_indices = @transform_0, window_bounds = array<i64: 2, 32, 64>}, {pipeline_mode = #tpu.pipeline_mode<synchronous>, transform_indices = @transform_1, window_bounds = array<i64: 32, 512>}, {pipeline_mode = #tpu.pipeline_mode<synchronous>, transform_indices = @transform_2, window_bounds = array<i64: 32, 512>}, {pipeline_mode = #tpu.pipeline_mode<synchronous>, transform_indices = @transform_3, window_bounds = array<i64: 1, 512>}, {pipeline_mode = #tpu.pipeline_mode<synchronous>, transform_indices = @transform_4, window_bounds = array<i64: 1, 512>}, {pipeline_mode = #tpu.pipeline_mode<synchronous>, transform_indices = @transform_5, window_bounds = array<i64: 512, 256>}, {pipeline_mode = #tpu.pipeline_mode<synchronous>, transform_indices = @transform_6, window_bounds = array<i64: 1, 256>}, {pipeline_mode = #tpu.pipeline_mode<synchronous>, transform_indices = @transform_7, window_bounds = array<i64: 1, 256>}, {pipeline_mode = #tpu.pipeline_mode<synchronous>, transform_indices = @transform_8, window_bounds = array<i64: 1, 256>}, {pipeline_mode = #tpu.pipeline_mode<synchronous>, transform_indices = @transform_9, window_bounds = array<i64: 256, 128>}, {pipeline_mode = #tpu.pipeline_mode<synchronous>, transform_indices = @transform_10, window_bounds = array<i64: 1, 128>}, {transform_indices = @transform_11, window_bounds = array<i64: 2, 128>}]} {
    %c0_i32 = arith.constant 0 : i32
    %0 = arith.cmpi eq, %arg1, %c0_i32 : i32
    %1 = arith.extui %0 : i1 to i32
    %c0_i32_0 = arith.constant 0 : i32
    %2 = arith.cmpi ne, %1, %c0_i32_0 : i32
    scf.if %2 {
      %cst = arith.constant 0xFF800000 : f32
      %14 = vector.broadcast %cst : f32 to vector<2x32x64xf32>
      %c0_17 = arith.constant 0 : index
      %c0_18 = arith.constant 0 : index
      %c0_19 = arith.constant 0 : index
      %15 = vector.load %arg14[%c0_17, %c0_18, %c0_19] : memref<2x32x64xf32, #tpu.memory_space<vmem>>, vector<2x32x64xf32>
      tpu.vector_store %arg14[%c0_17, %c0_18, %c0_19], %14 {strides = array<i32>} : memref<2x32x64xf32, #tpu.memory_space<vmem>>, vector<2x32x64xf32>,
      %cst_20 = arith.constant 0.000000e+00 : f32
      %16 = vector.broadcast %cst_20 : f32 to vector<2x32x64xf32>
      %c0_21 = arith.constant 0 : index
      %c0_22 = arith.constant 0 : index
      %c0_23 = arith.constant 0 : index
      %17 = vector.load %arg15[%c0_21, %c0_22, %c0_23] : memref<2x32x64xf32, #tpu.memory_space<vmem>>, vector<2x32x64xf32>
      tpu.vector_store %arg15[%c0_21, %c0_22, %c0_23], %16 {strides = array<i32>} : memref<2x32x64xf32, #tpu.memory_space<vmem>>, vector<2x32x64xf32>,
    } else {
    }
    %c0 = arith.constant 0 : index
    %c0_1 = arith.constant 0 : index
    %c0_2 = arith.constant 0 : index
    %3 = vector.load %arg14[%c0, %c0_1, %c0_2] : memref<2x32x64xf32, #tpu.memory_space<vmem>>, vector<2x32x64xf32>
    %c0_3 = arith.constant 0 : index
    %c0_4 = arith.constant 0 : index
    %c0_5 = arith.constant 0 : index
    %4 = vector.load %arg15[%c0_3, %c0_4, %c0_5] : memref<2x32x64xf32, #tpu.memory_space<vmem>>, vector<2x32x64xf32>
    %c0_6 = arith.constant 0 : index
    %c0_7 = arith.constant 0 : index
    %c0_8 = arith.constant 0 : index
    %5 = vector.load %arg2[%c0_6, %c0_7, %c0_8] : memref<2x32x64xbf16, #tpu.memory_space<vmem>>, vector<2x32x64xbf16>
    %6 = arith.extf %5 : vector<2x32x64xbf16> to vector<2x32x64xf32>
    %7 = arith.maximumf %3, %6 : vector<2x32x64xf32>
    %8 = arith.addf %4, %6 : vector<2x32x64xf32>
    %c0_9 = arith.constant 0 : index
    %c0_10 = arith.constant 0 : index
    %c0_11 = arith.constant 0 : index
    %9 = vector.load %arg14[%c0_9, %c0_10, %c0_11] : memref<2x32x64xf32, #tpu.memory_space<vmem>>, vector<2x32x64xf32>
    tpu.vector_store %arg14[%c0_9, %c0_10, %c0_11], %7 {strides = array<i32>} : memref<2x32x64xf32, #tpu.memory_space<vmem>>, vector<2x32x64xf32>,
    %c0_12 = arith.constant 0 : index
    %c0_13 = arith.constant 0 : index
    %c0_14 = arith.constant 0 : index
    %10 = vector.load %arg15[%c0_12, %c0_13, %c0_14] : memref<2x32x64xf32, #tpu.memory_space<vmem>>, vector<2x32x64xf32>
    tpu.vector_store %arg15[%c0_12, %c0_13, %c0_14], %8 {strides = array<i32>} : memref<2x32x64xf32, #tpu.memory_space<vmem>>, vector<2x32x64xf32>,
    %c0_i32_15 = arith.constant 0 : i32
    %11 = arith.cmpi eq, %arg1, %c0_i32_15 : i32
    %12 = arith.extui %11 : i1 to i32
    %c0_i32_16 = arith.constant 0 : i32
    %13 = arith.cmpi ne, %12, %c0_i32_16 : i32
    scf.if %13 {
      %c0_17 = arith.constant 0 : index
      %c0_18 = arith.constant 0 : index
      %c0_19 = arith.constant 0 : index
      %14 = vector.load %arg14[%c0_17, %c0_18, %c0_19] : memref<2x32x64xf32, #tpu.memory_space<vmem>>, vector<2x32x64xf32>
      %cst = arith.constant dense<0xFF800000> : vector<2x32xf32>
      %15 = vector.multi_reduction <maximumf>, %14, %cst [2] : vector<2x32x64xf32> to vector<2x32xf32>
      %c0_20 = arith.constant 0 : index
      %c0_21 = arith.constant 0 : index
      %c0_22 = arith.constant 0 : index
      %16 = vector.load %arg15[%c0_20, %c0_21, %c0_22] : memref<2x32x64xf32, #tpu.memory_space<vmem>>, vector<2x32x64xf32>
      %cst_23 = arith.constant dense<0.000000e+00> : vector<2x32xf32>
      %17 = vector.multi_reduction <add>, %16, %cst_23 [2] : vector<2x32x64xf32> to vector<2x32xf32>
      %cst_24 = arith.constant 1.562500e-02 : f32
      %18 = vector.broadcast %cst_24 : f32 to vector<2x32xf32>
      %19 = arith.mulf %17, %18 : vector<2x32xf32>
      %20 = arith.truncf %15 : vector<2x32xf32> to vector<2x32xbf16>
      %21 = arith.truncf %19 : vector<2x32xf32> to vector<2x32xbf16>
      %c0_25 = arith.constant 0 : index
      %c0_26 = arith.constant 0 : index
      %22 = vector.load %arg3[%c0_25, %c0_26] : memref<32x512xbf16, #tpu.memory_space<vmem>>, vector<32x128xbf16>
      %cst_27 = arith.constant dense<0.000000e+00> : vector<2x128xf32>
      %23 = tpu.matmul %20, %22, %cst_27 {dimension_numbers = #tpu.dot_dimension_numbers<[1], [0], [0], [1], [0, 0, 1, 1], [], []>} : vector<2x32xbf16>, vector<32x128xbf16>, vector<2x128xf32> -> vector<2x128xf32>
      %c0_28 = arith.constant 0 : index
      %c0_29 = arith.constant 0 : index
      %24 = vector.load %arg4[%c0_28, %c0_29] : memref<32x512xbf16, #tpu.memory_space<vmem>>, vector<32x128xbf16>
      %cst_30 = arith.constant dense<0.000000e+00> : vector<2x128xf32>
      %25 = tpu.matmul %21, %24, %cst_30 {dimension_numbers = #tpu.dot_dimension_numbers<[1], [0], [0], [1], [0, 0, 1, 1], [], []>} : vector<2x32xbf16>, vector<32x128xbf16>, vector<2x128xf32> -> vector<2x128xf32>
      %26 = arith.addf %23, %25 : vector<2x128xf32>
      %c0_31 = arith.constant 0 : index
      %c0_32 = arith.constant 0 : index
      %27 = vector.load %arg5[%c0_31, %c0_32] : memref<1x512xf32, #tpu.memory_space<vmem>>, vector<1x128xf32>
      %28 = vector.broadcast %27 : vector<1x128xf32> to vector<2x128xf32>
      %29 = arith.mulf %26, %28 : vector<2x128xf32>
      %c0_33 = arith.constant 0 : index
      %c0_34 = arith.constant 0 : index
      %30 = vector.load %arg6[%c0_33, %c0_34] : memref<1x512xf32, #tpu.memory_space<vmem>>, vector<1x128xf32>
      %31 = vector.broadcast %30 : vector<1x128xf32> to vector<2x128xf32>
      %32 = arith.addf %29, %31 : vector<2x128xf32>
      %cst_35 = arith.constant 0.000000e+00 : f32
      %33 = vector.broadcast %cst_35 : f32 to vector<2x128xf32>
      %34 = arith.cmpf ogt, %32, %33 : vector<2x128xf32>
      %cst_36 = arith.constant 2.000000e-01 : f32
      %35 = vector.broadcast %cst_36 : f32 to vector<2x128xf32>
      %36 = arith.mulf %35, %32 : vector<2x128xf32>
      %37 = arith.select %34, %32, %36 : vector<2x128xi1>, vector<2x128xf32>
      %38 = arith.truncf %37 : vector<2x128xf32> to vector<2x128xbf16>
      %c0_37 = arith.constant 0 : index
      %c0_38 = arith.constant 0 : index
      %39 = vector.load %arg7[%c0_37, %c0_38] : memref<512x256xbf16, #tpu.memory_space<vmem>>, vector<128x256xbf16>
      %cst_39 = arith.constant dense<0.000000e+00> : vector<2x256xf32>
      %40 = tpu.matmul %38, %39, %cst_39 {dimension_numbers = #tpu.dot_dimension_numbers<[1], [0], [0], [1], [0, 0, 1, 1], [], []>} : vector<2x128xbf16>, vector<128x256xbf16>, vector<2x256xf32> -> vector<2x256xf32>
      %c0_40 = arith.constant 0 : index
      %c128 = arith.constant 128 : index
      %41 = vector.load %arg3[%c0_40, %c128] : memref<32x512xbf16, #tpu.memory_space<vmem>>, vector<32x128xbf16>
      %cst_41 = arith.constant dense<0.000000e+00> : vector<2x128xf32>
      %42 = tpu.matmul %20, %41, %cst_41 {dimension_numbers = #tpu.dot_dimension_numbers<[1], [0], [0], [1], [0, 0, 1, 1], [], []>} : vector<2x32xbf16>, vector<32x128xbf16>, vector<2x128xf32> -> vector<2x128xf32>
      %c0_42 = arith.constant 0 : index
      %c128_43 = arith.constant 128 : index
      %43 = vector.load %arg4[%c0_42, %c128_43] : memref<32x512xbf16, #tpu.memory_space<vmem>>, vector<32x128xbf16>
      %cst_44 = arith.constant dense<0.000000e+00> : vector<2x128xf32>
      %44 = tpu.matmul %21, %43, %cst_44 {dimension_numbers = #tpu.dot_dimension_numbers<[1], [0], [0], [1], [0, 0, 1, 1], [], []>} : vector<2x32xbf16>, vector<32x128xbf16>, vector<2x128xf32> -> vector<2x128xf32>
      %45 = arith.addf %42, %44 : vector<2x128xf32>
      %c0_45 = arith.constant 0 : index
      %c128_46 = arith.constant 128 : index
      %46 = vector.load %arg5[%c0_45, %c128_46] : memref<1x512xf32, #tpu.memory_space<vmem>>, vector<1x128xf32>
      %47 = vector.broadcast %46 : vector<1x128xf32> to vector<2x128xf32>
      %48 = arith.mulf %45, %47 : vector<2x128xf32>
      %c0_47 = arith.constant 0 : index
      %c128_48 = arith.constant 128 : index
      %49 = vector.load %arg6[%c0_47, %c128_48] : memref<1x512xf32, #tpu.memory_space<vmem>>, vector<1x128xf32>
      %50 = vector.broadcast %49 : vector<1x128xf32> to vector<2x128xf32>
      %51 = arith.addf %48, %50 : vector<2x128xf32>
      %cst_49 = arith.constant 0.000000e+00 : f32
      %52 = vector.broadcast %cst_49 : f32 to vector<2x128xf32>
      %53 = arith.cmpf ogt, %51, %52 : vector<2x128xf32>
      %cst_50 = arith.constant 2.000000e-01 : f32
      %54 = vector.broadcast %cst_50 : f32 to vector<2x128xf32>
      %55 = arith.mulf %54, %51 : vector<2x128xf32>
      %56 = arith.select %53, %51, %55 : vector<2x128xi1>, vector<2x128xf32>
      %57 = arith.truncf %56 : vector<2x128xf32> to vector<2x128xbf16>
      %c128_51 = arith.constant 128 : index
      %c0_52 = arith.constant 0 : index
      %58 = vector.load %arg7[%c128_51, %c0_52] : memref<512x256xbf16, #tpu.memory_space<vmem>>, vector<128x256xbf16>
      %cst_53 = arith.constant dense<0.000000e+00> : vector<2x256xf32>
      %59 = tpu.matmul %57, %58, %cst_53 {dimension_numbers = #tpu.dot_dimension_numbers<[1], [0], [0], [1], [0, 0, 1, 1], [], []>} : vector<2x128xbf16>, vector<128x256xbf16>, vector<2x256xf32> -> vector<2x256xf32>
      %60 = arith.addf %40, %59 : vector<2x256xf32>
      %c0_54 = arith.constant 0 : index
      %c256 = arith.constant 256 : index
      %61 = vector.load %arg3[%c0_54, %c256] : memref<32x512xbf16, #tpu.memory_space<vmem>>, vector<32x128xbf16>
      %cst_55 = arith.constant dense<0.000000e+00> : vector<2x128xf32>
      %62 = tpu.matmul %20, %61, %cst_55 {dimension_numbers = #tpu.dot_dimension_numbers<[1], [0], [0], [1], [0, 0, 1, 1], [], []>} : vector<2x32xbf16>, vector<32x128xbf16>, vector<2x128xf32> -> vector<2x128xf32>
      %c0_56 = arith.constant 0 : index
      %c256_57 = arith.constant 256 : index
      %63 = vector.load %arg4[%c0_56, %c256_57] : memref<32x512xbf16, #tpu.memory_space<vmem>>, vector<32x128xbf16>
      %cst_58 = arith.constant dense<0.000000e+00> : vector<2x128xf32>
      %64 = tpu.matmul %21, %63, %cst_58 {dimension_numbers = #tpu.dot_dimension_numbers<[1], [0], [0], [1], [0, 0, 1, 1], [], []>} : vector<2x32xbf16>, vector<32x128xbf16>, vector<2x128xf32> -> vector<2x128xf32>
      %65 = arith.addf %62, %64 : vector<2x128xf32>
      %c0_59 = arith.constant 0 : index
      %c256_60 = arith.constant 256 : index
      %66 = vector.load %arg5[%c0_59, %c256_60] : memref<1x512xf32, #tpu.memory_space<vmem>>, vector<1x128xf32>
      %67 = vector.broadcast %66 : vector<1x128xf32> to vector<2x128xf32>
      %68 = arith.mulf %65, %67 : vector<2x128xf32>
      %c0_61 = arith.constant 0 : index
      %c256_62 = arith.constant 256 : index
      %69 = vector.load %arg6[%c0_61, %c256_62] : memref<1x512xf32, #tpu.memory_space<vmem>>, vector<1x128xf32>
      %70 = vector.broadcast %69 : vector<1x128xf32> to vector<2x128xf32>
      %71 = arith.addf %68, %70 : vector<2x128xf32>
      %cst_63 = arith.constant 0.000000e+00 : f32
      %72 = vector.broadcast %cst_63 : f32 to vector<2x128xf32>
      %73 = arith.cmpf ogt, %71, %72 : vector<2x128xf32>
      %cst_64 = arith.constant 2.000000e-01 : f32
      %74 = vector.broadcast %cst_64 : f32 to vector<2x128xf32>
      %75 = arith.mulf %74, %71 : vector<2x128xf32>
      %76 = arith.select %73, %71, %75 : vector<2x128xi1>, vector<2x128xf32>
      %77 = arith.truncf %76 : vector<2x128xf32> to vector<2x128xbf16>
      %c256_65 = arith.constant 256 : index
      %c0_66 = arith.constant 0 : index
      %78 = vector.load %arg7[%c256_65, %c0_66] : memref<512x256xbf16, #tpu.memory_space<vmem>>, vector<128x256xbf16>
      %cst_67 = arith.constant dense<0.000000e+00> : vector<2x256xf32>
      %79 = tpu.matmul %77, %78, %cst_67 {dimension_numbers = #tpu.dot_dimension_numbers<[1], [0], [0], [1], [0, 0, 1, 1], [], []>} : vector<2x128xbf16>, vector<128x256xbf16>, vector<2x256xf32> -> vector<2x256xf32>
      %80 = arith.addf %60, %79 : vector<2x256xf32>
      %c0_68 = arith.constant 0 : index
      %c384 = arith.constant 384 : index
      %81 = vector.load %arg3[%c0_68, %c384] : memref<32x512xbf16, #tpu.memory_space<vmem>>, vector<32x128xbf16>
      %cst_69 = arith.constant dense<0.000000e+00> : vector<2x128xf32>
      %82 = tpu.matmul %20, %81, %cst_69 {dimension_numbers = #tpu.dot_dimension_numbers<[1], [0], [0], [1], [0, 0, 1, 1], [], []>} : vector<2x32xbf16>, vector<32x128xbf16>, vector<2x128xf32> -> vector<2x128xf32>
      %c0_70 = arith.constant 0 : index
      %c384_71 = arith.constant 384 : index
      %83 = vector.load %arg4[%c0_70, %c384_71] : memref<32x512xbf16, #tpu.memory_space<vmem>>, vector<32x128xbf16>
      %cst_72 = arith.constant dense<0.000000e+00> : vector<2x128xf32>
      %84 = tpu.matmul %21, %83, %cst_72 {dimension_numbers = #tpu.dot_dimension_numbers<[1], [0], [0], [1], [0, 0, 1, 1], [], []>} : vector<2x32xbf16>, vector<32x128xbf16>, vector<2x128xf32> -> vector<2x128xf32>
      %85 = arith.addf %82, %84 : vector<2x128xf32>
      %c0_73 = arith.constant 0 : index
      %c384_74 = arith.constant 384 : index
      %86 = vector.load %arg5[%c0_73, %c384_74] : memref<1x512xf32, #tpu.memory_space<vmem>>, vector<1x128xf32>
      %87 = vector.broadcast %86 : vector<1x128xf32> to vector<2x128xf32>
      %88 = arith.mulf %85, %87 : vector<2x128xf32>
      %c0_75 = arith.constant 0 : index
      %c384_76 = arith.constant 384 : index
      %89 = vector.load %arg6[%c0_75, %c384_76] : memref<1x512xf32, #tpu.memory_space<vmem>>, vector<1x128xf32>
      %90 = vector.broadcast %89 : vector<1x128xf32> to vector<2x128xf32>
      %91 = arith.addf %88, %90 : vector<2x128xf32>
      %cst_77 = arith.constant 0.000000e+00 : f32
      %92 = vector.broadcast %cst_77 : f32 to vector<2x128xf32>
      %93 = arith.cmpf ogt, %91, %92 : vector<2x128xf32>
      %cst_78 = arith.constant 2.000000e-01 : f32
      %94 = vector.broadcast %cst_78 : f32 to vector<2x128xf32>
      %95 = arith.mulf %94, %91 : vector<2x128xf32>
      %96 = arith.select %93, %91, %95 : vector<2x128xi1>, vector<2x128xf32>
      %97 = arith.truncf %96 : vector<2x128xf32> to vector<2x128xbf16>
      %c384_79 = arith.constant 384 : index
      %c0_80 = arith.constant 0 : index
      %98 = vector.load %arg7[%c384_79, %c0_80] : memref<512x256xbf16, #tpu.memory_space<vmem>>, vector<128x256xbf16>
      %cst_81 = arith.constant dense<0.000000e+00> : vector<2x256xf32>
      %99 = tpu.matmul %97, %98, %cst_81 {dimension_numbers = #tpu.dot_dimension_numbers<[1], [0], [0], [1], [0, 0, 1, 1], [], []>} : vector<2x128xbf16>, vector<128x256xbf16>, vector<2x256xf32> -> vector<2x256xf32>
      %100 = arith.addf %80, %99 : vector<2x256xf32>
      %c0_82 = arith.constant 0 : index
      %c0_83 = arith.constant 0 : index
      %101 = vector.load %arg8[%c0_82, %c0_83] : memref<1x256xf32, #tpu.memory_space<vmem>>, vector<1x256xf32>
      %102 = vector.broadcast %101 : vector<1x256xf32> to vector<2x256xf32>
      %103 = arith.addf %100, %102 : vector<2x256xf32>
      %c0_84 = arith.constant 0 : index
      %c0_85 = arith.constant 0 : index
      %104 = vector.load %arg9[%c0_84, %c0_85] : memref<1x256xf32, #tpu.memory_space<vmem>>, vector<1x256xf32>
      %105 = vector.broadcast %104 : vector<1x256xf32> to vector<2x256xf32>
      %106 = arith.mulf %103, %105 : vector<2x256xf32>
      %c0_86 = arith.constant 0 : index
      %c0_87 = arith.constant 0 : index
      %107 = vector.load %arg10[%c0_86, %c0_87] : memref<1x256xf32, #tpu.memory_space<vmem>>, vector<1x256xf32>
      %108 = vector.broadcast %107 : vector<1x256xf32> to vector<2x256xf32>
      %109 = arith.addf %106, %108 : vector<2x256xf32>
      %cst_88 = arith.constant 0.000000e+00 : f32
      %110 = vector.broadcast %cst_88 : f32 to vector<2x256xf32>
      %111 = arith.cmpf ogt, %109, %110 : vector<2x256xf32>
      %cst_89 = arith.constant 2.000000e-01 : f32
      %112 = vector.broadcast %cst_89 : f32 to vector<2x256xf32>
      %113 = arith.mulf %112, %109 : vector<2x256xf32>
      %114 = arith.select %111, %109, %113 : vector<2x256xi1>, vector<2x256xf32>
      %115 = arith.truncf %114 : vector<2x256xf32> to vector<2x256xbf16>
      %c0_90 = arith.constant 0 : index
      %c0_91 = arith.constant 0 : index
      %116 = vector.load %arg11[%c0_90, %c0_91] : memref<256x128xbf16, #tpu.memory_space<vmem>>, vector<256x128xbf16>
      %cst_92 = arith.constant dense<0.000000e+00> : vector<2x128xf32>
      %117 = tpu.matmul %115, %116, %cst_92 {dimension_numbers = #tpu.dot_dimension_numbers<[1], [0], [0], [1], [0, 0, 1, 1], [], []>} : vector<2x256xbf16>, vector<256x128xbf16>, vector<2x128xf32> -> vector<2x128xf32>
      %c0_93 = arith.constant 0 : index
      %c0_94 = arith.constant 0 : index
      %118 = vector.load %arg12[%c0_93, %c0_94] : memref<1x128xf32, #tpu.memory_space<vmem>>, vector<1x128xf32>
      %119 = vector.broadcast %118 : vector<1x128xf32> to vector<2x128xf32>
      %120 = arith.addf %117, %119 : vector<2x128xf32>
      %c0_95 = arith.constant 0 : index
      %c0_96 = arith.constant 0 : index
      %121 = vector.load %arg13[%c0_95, %c0_96] : memref<2x128xf32, #tpu.memory_space<vmem>>, vector<2x128xf32>
      tpu.vector_store %arg13[%c0_95, %c0_96], %120 {strides = array<i32>} : memref<2x128xf32, #tpu.memory_space<vmem>>, vector<2x128xf32>,
    } else {
    }
    return
  }
  func.func @transform_0(%arg0: i32, %arg1: i32) -> (i32, i32, i32) {
    %c0_i32 = arith.constant 0 : i32
    %c0_i32_0 = arith.constant 0 : i32
    return %arg0, %c0_i32, %arg1 : i32, i32, i32
  }
  func.func @transform_1(%arg0: i32, %arg1: i32) -> (i32, i32) {
    %c0_i32 = arith.constant 0 : i32
    %c0_i32_0 = arith.constant 0 : i32
    %c0_i32_1 = arith.constant 0 : i32
    return %c0_i32, %c0_i32_0 : i32, i32
  }
  func.func @transform_2(%arg0: i32, %arg1: i32) -> (i32, i32) {
    %c0_i32 = arith.constant 0 : i32
    %c0_i32_0 = arith.constant 0 : i32
    %c0_i32_1 = arith.constant 0 : i32
    return %c0_i32, %c0_i32_0 : i32, i32
  }
  func.func @transform_3(%arg0: i32, %arg1: i32) -> (i32, i32) {
    %c0_i32 = arith.constant 0 : i32
    %c0_i32_0 = arith.constant 0 : i32
    %c0_i32_1 = arith.constant 0 : i32
    return %c0_i32, %c0_i32_0 : i32, i32
  }
  func.func @transform_4(%arg0: i32, %arg1: i32) -> (i32, i32) {
    %c0_i32 = arith.constant 0 : i32
    %c0_i32_0 = arith.constant 0 : i32
    %c0_i32_1 = arith.constant 0 : i32
    return %c0_i32, %c0_i32_0 : i32, i32
  }
  func.func @transform_5(%arg0: i32, %arg1: i32) -> (i32, i32) {
    %c0_i32 = arith.constant 0 : i32
    %c0_i32_0 = arith.constant 0 : i32
    %c0_i32_1 = arith.constant 0 : i32
    return %c0_i32, %c0_i32_0 : i32, i32
  }
  func.func @transform_6(%arg0: i32, %arg1: i32) -> (i32, i32) {
    %c0_i32 = arith.constant 0 : i32
    %c0_i32_0 = arith.constant 0 : i32
    %c0_i32_1 = arith.constant 0 : i32
    return %c0_i32, %c0_i32_0 : i32, i32
  }
  func.func @transform_7(%arg0: i32, %arg1: i32) -> (i32, i32) {
    %c0_i32 = arith.constant 0 : i32
    %c0_i32_0 = arith.constant 0 : i32
    %c0_i32_1 = arith.constant 0 : i32
    return %c0_i32, %c0_i32_0 : i32, i32
  }
  func.func @transform_8(%arg0: i32, %arg1: i32) -> (i32, i32) {
    %c0_i32 = arith.constant 0 : i32
    %c0_i32_0 = arith.constant 0 : i32
    %c0_i32_1 = arith.constant 0 : i32
    return %c0_i32, %c0_i32_0 : i32, i32
  }
  func.func @transform_9(%arg0: i32, %arg1: i32) -> (i32, i32) {
    %c0_i32 = arith.constant 0 : i32
    %c0_i32_0 = arith.constant 0 : i32
    %c0_i32_1 = arith.constant 0 : i32
    return %c0_i32, %c0_i32_0 : i32, i32
  }
  func.func @transform_10(%arg0: i32, %arg1: i32) -> (i32, i32) {
    %c0_i32 = arith.constant 0 : i32
    %c0_i32_0 = arith.constant 0 : i32
    %c0_i32_1 = arith.constant 0 : i32
    return %c0_i32, %c0_i32_0 : i32, i32
  }
  func.func @transform_11(%arg0: i32, %arg1: i32) -> (i32, i32) {
    %c0_i32 = arith.constant 0 : i32
    %c0_i32_0 = arith.constant 0 : i32
    return %arg0, %c0_i32 : i32, i32
  }
}

</mosaic_0001>

<llo_original>
// kernel: tpu_custom_call.1
$region0: #{tpu_custom_call.1}
  #allocation0 [shape = 'u32[]', space=smem, size = 0x4, offset = 0x4, fixed_abs, tag = 'smem constant byte address 0x4 - core index']
  #allocation1 [shape = 'u32[144,128]{1,0:T(1,128)}', space=vmem, size = 0x12000, scoped, tag = 'internal scratch']
  #allocation2 [shape = 'f32[2,32,64]{2,1,0:T(8,128)}', space=vmem, size = 0x8000, scoped, tag = 'scratch operand']
  #allocation3 [shape = 'f32[2,32,64]{2,1,0:T(8,128)}', space=vmem, size = 0x8000, scoped, tag = 'scratch operand']
  %s0 = inlined_call_operand.hbm [shape: bf16[2,32,64], index: 0, kind: input, shape index: {}]
  %s1 = inlined_call_operand.hbm [shape: bf16[32,512], index: 1, kind: input, shape index: {}]
  %s2 = inlined_call_operand.hbm [shape: bf16[32,512], index: 2, kind: input, shape index: {}]
  %s3 = inlined_call_operand.vmem [shape: f32[1,512], index: 3, kind: input, shape index: {}]
  %s4 = inlined_call_operand.hbm [shape: f32[1,512], index: 4, kind: input, shape index: {}]
  %s5 = inlined_call_operand.hbm [shape: bf16[512,256], index: 5, kind: input, shape index: {}]
  %s6 = inlined_call_operand.vmem [shape: f32[1,256], index: 6, kind: input, shape index: {}]
  %s7 = inlined_call_operand.vmem [shape: f32[1,256], index: 7, kind: input, shape index: {}]
  %s8 = inlined_call_operand.vmem [shape: f32[1,256], index: 8, kind: input, shape index: {}]
  %s9 = inlined_call_operand.hbm [shape: bf16[256,128], index: 9, kind: input, shape index: {}]
  %s10 = inlined_call_operand.vmem [shape: f32[1,128], index: 10, kind: input, shape index: {}]
  %s11 = inlined_call_operand.hbm [shape: f32[2,128], index: 11, kind: output, shape index: {}]
  %s12 = sld [smem:[#allocation0]]
  $region86: #{tpu_custom_call.1} parent=0
    _
  %s14 = ssub.s32 1, %s12
  %s15 = scalar_select 0, %s14, %s12
  $region1: #{tpu_custom_call.1} parent=0
    #allocation4 [shape = 'u8[16384]{0}', space=vmem, size = 0x4000, scoped, tag = 'input window, operand 0, single buffered']
    #allocation5 [shape = 's32[1]{0}', space=sflag, size = 0x4, scoped, tag = 'scoped memory for tpu_custom_call.1']
    #allocation6 [shape = 's32[1]{0}', space=sflag, size = 0x4, scoped, tag = 'scoped memory for tpu_custom_call.1']
    #allocation7 [shape = 'u8[32768]{0}', space=vmem, size = 0x8000, scoped, tag = 'input window, operand 1, single buffered']
    #allocation8 [shape = 's32[1]{0}', space=sflag, size = 0x4, scoped, tag = 'scoped memory for tpu_custom_call.1']
    #allocation9 [shape = 'u8[32768]{0}', space=vmem, size = 0x8000, scoped, tag = 'input window, operand 2, single buffered']
    #allocation10 [shape = 'u8[2048]{0}', space=vmem, size = 0x800, scoped, tag = 'input window, operand 4, single buffered']
    #allocation11 [shape = 's32[1]{0}', space=sflag, size = 0x4, scoped, tag = 'scoped memory for tpu_custom_call.1']
    #allocation12 [shape = 'u8[262144]{0}', space=vmem, size = 0x40000, scoped, tag = 'input window, operand 5, single buffered']
    #allocation13 [shape = 'u8[65536]{0}', space=vmem, size = 0x10000, scoped, tag = 'input window, operand 9, single buffered']
    #allocation14 [shape = 's32[1]{0}', space=sflag, size = 0x4, scoped, tag = 'scoped memory for tpu_custom_call.1']
    #allocation15 [shape = 'u8[1024]{0}', space=vmem, size = 0x400, scoped, tag = 'output window, operand 0, single buffered']
    %16 = vsyncpa [#allocation5], 0
    %17 = vsyncpa [#allocation8], 0
    %18 = vsyncpa [#allocation11], 0
    %19 = vsyncpa [#allocation14], 0
    %20 = vsyncpa [#allocation6], 0
    // Predicated region
    $region2: #{tpu_custom_call.1} parent=1 // pred_check
      _
    $region3: #{tpu_custom_call.1} parent=1 // pred_check_branch
      %22 = sbr.rel (0) target = $region5
    $region4: #{tpu_custom_call.1} parent=1 // pred_region
      %s24 = ssub.s32 512, 512
      %25 = vsyncadd [#allocation5], %s24
      %s26 = sshll.u32 [#allocation4], 4
      %s27 = int_to_ptr.vmem [resolvable:$true] %s26
      %32 = dma.hbm_to_vmem [thread:$0]  %s0, 512, %s27, [#allocation5], 64, 64, 4
    $region5: #{tpu_custom_call.1} parent=1 // pred_fallthru
      _
    // Predicated region
    $region6: #{tpu_custom_call.1} parent=1 // pred_check
      _
    $region7: #{tpu_custom_call.1} parent=1 // pred_check_branch
      %34 = sbr.rel (0) target = $region9
    $region8: #{tpu_custom_call.1} parent=1 // pred_region
      %s36 = ssub.s32 1024, 1024
      %37 = vsyncadd [#allocation8], %s36
      %s38 = sshll.u32 [#allocation7], 4
      %s39 = int_to_ptr.vmem [resolvable:$true] %s38
      %44 = dma.hbm_to_vmem [thread:$0]  %s1, 1024, %s39, [#allocation8], 256, 256, 16
    $region9: #{tpu_custom_call.1} parent=1 // pred_fallthru
      _
    // Predicated region
    $region10: #{tpu_custom_call.1} parent=1 // pred_check
      _
    $region11: #{tpu_custom_call.1} parent=1 // pred_check_branch
      %46 = sbr.rel (0) target = $region13
    $region12: #{tpu_custom_call.1} parent=1 // pred_region
      %s48 = ssub.s32 1024, 1024
      %49 = vsyncadd [#allocation8], %s48
      %s50 = sshll.u32 [#allocation9], 4
      %s51 = int_to_ptr.vmem [resolvable:$true] %s50
      %56 = dma.hbm_to_vmem [thread:$0]  %s2, 1024, %s51, [#allocation8], 256, 256, 16
    $region13: #{tpu_custom_call.1} parent=1 // pred_fallthru
      _
    // Predicated region
    $region14: #{tpu_custom_call.1} parent=1 // pred_check
      _
    $region15: #{tpu_custom_call.1} parent=1 // pred_check_branch
      %58 = sbr.rel (0) target = $region17
    $region16: #{tpu_custom_call.1} parent=1 // pred_region
      _
    $region17: #{tpu_custom_call.1} parent=1 // pred_fallthru
      _
    // Predicated region
    $region18: #{tpu_custom_call.1} parent=1 // pred_check
      _
    $region19: #{tpu_custom_call.1} parent=1 // pred_check_branch
      %60 = sbr.rel (0) target = $region21
    $region20: #{tpu_custom_call.1} parent=1 // pred_region
      %s62 = ssub.s32 64, 64
      %63 = vsyncadd [#allocation11], %s62
      %s65 = sshll.u32 [#allocation10], 4
      %s66 = int_to_ptr.vmem [resolvable:$true] %s65
      %68 = dma.hbm_to_vmem [thread:$0]  %s4, 64, %s66, [#allocation11]
    $region21: #{tpu_custom_call.1} parent=1 // pred_fallthru
      _
    // Predicated region
    $region22: #{tpu_custom_call.1} parent=1 // pred_check
      _
    $region23: #{tpu_custom_call.1} parent=1 // pred_check_branch
      %70 = sbr.rel (0) target = $region25
    $region24: #{tpu_custom_call.1} parent=1 // pred_region
      %s72 = ssub.s32 8192, 8192
      %73 = vsyncadd [#allocation11], %s72
      %s74 = sshll.u32 [#allocation12], 4
      %s75 = int_to_ptr.vmem [resolvable:$true] %s74
      %80 = dma.hbm_to_vmem [thread:$0]  %s5, 8192, %s75, [#allocation11], 128, 128, 8
    $region25: #{tpu_custom_call.1} parent=1 // pred_fallthru
      _
    // Predicated region
    $region26: #{tpu_custom_call.1} parent=1 // pred_check
      _
    $region27: #{tpu_custom_call.1} parent=1 // pred_check_branch
      %82 = sbr.rel (0) target = $region29
    $region28: #{tpu_custom_call.1} parent=1 // pred_region
      _
    $region29: #{tpu_custom_call.1} parent=1 // pred_fallthru
      _
    // Predicated region
    $region30: #{tpu_custom_call.1} parent=1 // pred_check
      _
    $region31: #{tpu_custom_call.1} parent=1 // pred_check_branch
      %84 = sbr.rel (0) target = $region33
    $region32: #{tpu_custom_call.1} parent=1 // pred_region
      _
    $region33: #{tpu_custom_call.1} parent=1 // pred_fallthru
      _
    // Predicated region
    $region34: #{tpu_custom_call.1} parent=1 // pred_check
      _
    $region35: #{tpu_custom_call.1} parent=1 // pred_check_branch
      %86 = sbr.rel (0) target = $region37
    $region36: #{tpu_custom_call.1} parent=1 // pred_region
      _
    $region37: #{tpu_custom_call.1} parent=1 // pred_fallthru
      _
    // Predicated region
    $region38: #{tpu_custom_call.1} parent=1 // pred_check
      _
    $region39: #{tpu_custom_call.1} parent=1 // pred_check_branch
      %88 = sbr.rel (0) target = $region41
    $region40: #{tpu_custom_call.1} parent=1 // pred_region
      %s90 = ssub.s32 2048, 2048
      %91 = vsyncadd [#allocation14], %s90
      %s92 = sshll.u32 [#allocation13], 4
      %s93 = int_to_ptr.vmem [resolvable:$true] %s92
      %98 = dma.hbm_to_vmem [thread:$0]  %s9, 2048, %s93, [#allocation14], 64, 64, 4
    $region41: #{tpu_custom_call.1} parent=1 // pred_fallthru
      _
    // Predicated region
    $region42: #{tpu_custom_call.1} parent=1 // pred_check
      _
    $region43: #{tpu_custom_call.1} parent=1 // pred_check_branch
      %100 = sbr.rel (0) target = $region45
    $region44: #{tpu_custom_call.1} parent=1 // pred_region
      _
    $region45: #{tpu_custom_call.1} parent=1 // pred_fallthru
      _
    // Predicated region
    $region46: #{tpu_custom_call.1} parent=1 // pred_check
      _
    $region47: #{tpu_custom_call.1} parent=1 // pred_check_branch
      %102 = sbr.rel (0) target = $region49
    $region48: #{tpu_custom_call.1} parent=1 // pred_region
      %103 = dma.done [#allocation5], 512
    $region49: #{tpu_custom_call.1} parent=1 // pred_fallthru
      _
    // Predicated region
    $region50: #{tpu_custom_call.1} parent=1 // pred_check
      _
    $region51: #{tpu_custom_call.1} parent=1 // pred_check_branch
      %105 = sbr.rel (0) target = $region53
    $region52: #{tpu_custom_call.1} parent=1 // pred_region
      %106 = dma.done [#allocation8], 1024
    $region53: #{tpu_custom_call.1} parent=1 // pred_fallthru
      _
    // Predicated region
    $region54: #{tpu_custom_call.1} parent=1 // pred_check
      _
    $region55: #{tpu_custom_call.1} parent=1 // pred_check_branch
      %108 = sbr.rel (0) target = $region57
    $region56: #{tpu_custom_call.1} parent=1 // pred_region
      %109 = dma.done [#allocation8], 1024
    $region57: #{tpu_custom_call.1} parent=1 // pred_fallthru
      _
    // Predicated region
    $region58: #{tpu_custom_call.1} parent=1 // pred_check
      _
    $region59: #{tpu_custom_call.1} parent=1 // pred_check_branch
      %111 = sbr.rel (0) target = $region61
    $region60: #{tpu_custom_call.1} parent=1 // pred_region
      %112 = dma.done [#allocation11], 64
    $region61: #{tpu_custom_call.1} parent=1 // pred_fallthru
      _
    // Predicated region
    $region62: #{tpu_custom_call.1} parent=1 // pred_check
      _
    $region63: #{tpu_custom_call.1} parent=1 // pred_check_branch
      %114 = sbr.rel (0) target = $region65
    $region64: #{tpu_custom_call.1} parent=1 // pred_region
      %115 = dma.done [#allocation11], 8192
    $region65: #{tpu_custom_call.1} parent=1 // pred_fallthru
      _
    // Predicated region
    $region66: #{tpu_custom_call.1} parent=1 // pred_check
      _
    $region67: #{tpu_custom_call.1} parent=1 // pred_check_branch
      %117 = sbr.rel (0) target = $region69
    $region68: #{tpu_custom_call.1} parent=1 // pred_region
      %118 = dma.done [#allocation14], 2048
    $region69: #{tpu_custom_call.1} parent=1 // pred_fallthru
      _
    %p120 = scmp.eq.s32.totalorder 0, 0
    // Predicated region
    $region70: #{tpu_custom_call.1} parent=1 // pred_check
      %p121 = pneg %p120
    $region71: #{tpu_custom_call.1} parent=1 // pred_check_branch
      %123 = sbr.rel (%p121) target = $region73
    $region72: #{tpu_custom_call.1} parent=1 // pred_region
      %vm124 = vcmask 523264
      %125 = vst.msk [vmem:[#allocation2] sm:$0xff] %vm124, -inf
      %126 = vst.msk [vmem:[#allocation2 + $0x8] sm:$0xff] %vm124, -inf
      %127 = vst.msk [vmem:[#allocation2 + $0x10] sm:$0xff] %vm124, -inf
      %128 = vst.msk [vmem:[#allocation2 + $0x18] sm:$0xff] %vm124, -inf
      %129 = vst.msk [vmem:[#allocation2 + $0x20] sm:$0xff] %vm124, -inf
      %130 = vst.msk [vmem:[#allocation2 + $0x28] sm:$0xff] %vm124, -inf
      %131 = vst.msk [vmem:[#allocation2 + $0x30] sm:$0xff] %vm124, -inf
      %132 = vst.msk [vmem:[#allocation2 + $0x38] sm:$0xff] %vm124, -inf
      %133 = vst.msk [vmem:[#allocation3] sm:$0xff] %vm124, 0.0
      %134 = vst.msk [vmem:[#allocation3 + $0x8] sm:$0xff] %vm124, 0.0
      %135 = vst.msk [vmem:[#allocation3 + $0x10] sm:$0xff] %vm124, 0.0
      %136 = vst.msk [vmem:[#allocation3 + $0x18] sm:$0xff] %vm124, 0.0
      %137 = vst.msk [vmem:[#allocation3 + $0x20] sm:$0xff] %vm124, 0.0
      %138 = vst.msk [vmem:[#allocation3 + $0x28] sm:$0xff] %vm124, 0.0
      %139 = vst.msk [vmem:[#allocation3 + $0x30] sm:$0xff] %vm124, 0.0
      %140 = vst.msk [vmem:[#allocation3 + $0x38] sm:$0xff] %vm124, 0.0
    $region73: #{tpu_custom_call.1} parent=1 // pred_fallthru
      _
    %v141 = vld [vmem:[#allocation2] sm:$0xff]
    %v142 = vld [vmem:[#allocation2 + $0x8] sm:$0xff]
    %v143 = vld [vmem:[#allocation2 + $0x10] sm:$0xff]
    %v144 = vld [vmem:[#allocation2 + $0x18] sm:$0xff]
    %v145 = vld [vmem:[#allocation2 + $0x20] sm:$0xff]
    %v146 = vld [vmem:[#allocation2 + $0x28] sm:$0xff]
    %v147 = vld [vmem:[#allocation2 + $0x30] sm:$0xff]
    %v148 = vld [vmem:[#allocation2 + $0x38] sm:$0xff]
    %v149 = vld [vmem:[#allocation3] sm:$0xff]
    %v150 = vld [vmem:[#allocation3 + $0x8] sm:$0xff]
    %v151 = vld [vmem:[#allocation3 + $0x10] sm:$0xff]
    %v152 = vld [vmem:[#allocation3 + $0x18] sm:$0xff]
    %v153 = vld [vmem:[#allocation3 + $0x20] sm:$0xff]
    %v154 = vld [vmem:[#allocation3 + $0x28] sm:$0xff]
    %v155 = vld [vmem:[#allocation3 + $0x30] sm:$0xff]
    %v156 = vld [vmem:[#allocation3 + $0x38] sm:$0xff]
    %v157 = vld [vmem:[#allocation4] sm:$0xf]
    %v158 = vld [vmem:[#allocation4 + $0x4] sm:$0xf]
    %v159 = vld [vmem:[#allocation4 + $0x8] sm:$0xf]
    %v160 = vld [vmem:[#allocation4 + $0xc] sm:$0xf]
    %v161 = vld [vmem:[#allocation4 + $0x10] sm:$0xf]
    %v162 = vld [vmem:[#allocation4 + $0x14] sm:$0xf]
    %v163 = vld [vmem:[#allocation4 + $0x18] sm:$0xf]
    %v164 = vld [vmem:[#allocation4 + $0x1c] sm:$0xf]
    %v165 = vunpack.c.l.bf16 %v157
    %v166 = vunpack.c.l.bf16 %v158
    %v167 = vunpack.c.l.bf16 %v159
    %v168 = vunpack.c.l.bf16 %v160
    %v169 = vunpack.c.l.bf16 %v161
    %v170 = vunpack.c.l.bf16 %v162
    %v171 = vunpack.c.l.bf16 %v163
    %v172 = vunpack.c.l.bf16 %v164
    %v173 = vmax.f32 %v141, %v165
    %v174 = vmax.f32 %v142, %v166
    %v175 = vmax.f32 %v143, %v167
    %v176 = vmax.f32 %v144, %v168
    %v177 = vmax.f32 %v145, %v169
    %v178 = vmax.f32 %v146, %v170
    %v179 = vmax.f32 %v147, %v171
    %v180 = vmax.f32 %v148, %v172
    %v181 = vadd.f32 %v149, %v165
    %v182 = vadd.f32 %v150, %v166
    %v183 = vadd.f32 %v151, %v167
    %v184 = vadd.f32 %v152, %v168
    %v185 = vadd.f32 %v153, %v169
    %v186 = vadd.f32 %v154, %v170
    %v187 = vadd.f32 %v155, %v171
    %v188 = vadd.f32 %v156, %v172
    %vm189 = vcmask 523264
    %190 = vst.msk [vmem:[#allocation2] sm:$0xff] %vm189, %v173
    %191 = vst.msk [vmem:[#allocation2 + $0x8] sm:$0xff] %vm189, %v174
    %192 = vst.msk [vmem:[#allocation2 + $0x10] sm:$0xff] %vm189, %v175
    %193 = vst.msk [vmem:[#allocation2 + $0x18] sm:$0xff] %vm189, %v176
    %194 = vst.msk [vmem:[#allocation2 + $0x20] sm:$0xff] %vm189, %v177
    %195 = vst.msk [vmem:[#allocation2 + $0x28] sm:$0xff] %vm189, %v178
    %196 = vst.msk [vmem:[#allocation2 + $0x30] sm:$0xff] %vm189, %v179
    %197 = vst.msk [vmem:[#allocation2 + $0x38] sm:$0xff] %vm189, %v180
    %198 = vst.msk [vmem:[#allocation3] sm:$0xff] %vm189, %v181
    %199 = vst.msk [vmem:[#allocation3 + $0x8] sm:$0xff] %vm189, %v182
    %200 = vst.msk [vmem:[#allocation3 + $0x10] sm:$0xff] %vm189, %v183
    %201 = vst.msk [vmem:[#allocation3 + $0x18] sm:$0xff] %vm189, %v184
    %202 = vst.msk [vmem:[#allocation3 + $0x20] sm:$0xff] %vm189, %v185
    %203 = vst.msk [vmem:[#allocation3 + $0x28] sm:$0xff] %vm189, %v186
    %204 = vst.msk [vmem:[#allocation3 + $0x30] sm:$0xff] %vm189, %v187
    %205 = vst.msk [vmem:[#allocation3 + $0x38] sm:$0xff] %vm189, %v188
    // Predicated region
    $region74: #{tpu_custom_call.1} parent=1 // pred_check
      %p206 = pneg %p120
    $region75: #{tpu_custom_call.1} parent=1 // pred_check_branch
      %208 = sbr.rel (%p206) target = $region77
    $region76: #{tpu_custom_call.1} parent=1 // pred_region
      %v209 = vld [vmem:[#allocation2] sm:$0xff]
      %v210 = vld [vmem:[#allocation2 + $0x8] sm:$0xff]
      %v211 = vld [vmem:[#allocation2 + $0x10] sm:$0xff]
      %v212 = vld [vmem:[#allocation2 + $0x18] sm:$0xff]
      %v213 = vld [vmem:[#allocation2 + $0x20] sm:$0xff]
      %v214 = vld [vmem:[#allocation2 + $0x28] sm:$0xff]
      %v215 = vld [vmem:[#allocation2 + $0x30] sm:$0xff]
      %v216 = vld [vmem:[#allocation2 + $0x38] sm:$0xff]
      %v217 = vsel %vm189, %v209, -inf
      %218 = vmax.xlane.f32.xlu0 %v217
      %v219 = vpop.xlane.xlu0 %218
      %v220 = vsel %vm189, %v210, -inf
      %221 = vmax.xlane.f32.xlu0 %v220
      %v222 = vpop.xlane.xlu0 %221
      %v223 = vsel %vm189, %v211, -inf
      %224 = vmax.xlane.f32.xlu0 %v223
      %v225 = vpop.xlane.xlu0 %224
      %v226 = vsel %vm189, %v212, -inf
      %227 = vmax.xlane.f32.xlu0 %v226
      %v228 = vpop.xlane.xlu0 %227
      %v229 = vsel %vm189, %v213, -inf
      %230 = vmax.xlane.f32.xlu0 %v229
      %v231 = vpop.xlane.xlu0 %230
      %v232 = vsel %vm189, %v214, -inf
      %233 = vmax.xlane.f32.xlu0 %v232
      %v234 = vpop.xlane.xlu0 %233
      %v235 = vsel %vm189, %v215, -inf
      %236 = vmax.xlane.f32.xlu0 %v235
      %v237 = vpop.xlane.xlu0 %236
      %v238 = vsel %vm189, %v216, -inf
      %239 = vmax.xlane.f32.xlu0 %v238
      %v240 = vpop.xlane.xlu0 %239
      %v241 = vld [vmem:[#allocation3] sm:$0xff]
      %v242 = vld [vmem:[#allocation3 + $0x8] sm:$0xff]
      %v243 = vld [vmem:[#allocation3 + $0x10] sm:$0xff]
      %v244 = vld [vmem:[#allocation3 + $0x18] sm:$0xff]
      %v245 = vld [vmem:[#allocation3 + $0x20] sm:$0xff]
      %v246 = vld [vmem:[#allocation3 + $0x28] sm:$0xff]
      %v247 = vld [vmem:[#allocation3 + $0x30] sm:$0xff]
      %v248 = vld [vmem:[#allocation3 + $0x38] sm:$0xff]
      %v249 = vsel %vm189, %v241, 0.0
      %250 = vadd.xlane.f32.xlu0 %v249
      %v251 = vpop.xlane.xlu0 %250
      %v252 = vsel %vm189, %v242, 0.0
      %253 = vadd.xlane.f32.xlu0 %v252
      %v254 = vpop.xlane.xlu0 %253
      %v255 = vsel %vm189, %v243, 0.0
      %256 = vadd.xlane.f32.xlu0 %v255
      %v257 = vpop.xlane.xlu0 %256
      %v258 = vsel %vm189, %v244, 0.0
      %259 = vadd.xlane.f32.xlu0 %v258
      %v260 = vpop.xlane.xlu0 %259
      %v261 = vsel %vm189, %v245, 0.0
      %262 = vadd.xlane.f32.xlu0 %v261
      %v263 = vpop.xlane.xlu0 %262
      %v264 = vsel %vm189, %v246, 0.0
      %265 = vadd.xlane.f32.xlu0 %v264
      %v266 = vpop.xlane.xlu0 %265
      %v267 = vsel %vm189, %v247, 0.0
      %268 = vadd.xlane.f32.xlu0 %v267
      %v269 = vpop.xlane.xlu0 %268
      %v270 = vsel %vm189, %v248, 0.0
      %271 = vadd.xlane.f32.xlu0 %v270
      %v272 = vpop.xlane.xlu0 %271
      %v273 = vmul.f32 %v251, 0.015625
      %v274 = vmul.f32 %v254, 0.015625
      %v275 = vmul.f32 %v257, 0.015625
      %v276 = vmul.f32 %v260, 0.015625
      %v277 = vmul.f32 %v263, 0.015625
      %v278 = vmul.f32 %v266, 0.015625
      %v279 = vmul.f32 %v269, 0.015625
      %v280 = vmul.f32 %v272, 0.015625
      %v281 = vpack.c.bf16 %v222, %v219
      %v282 = vpack.c.bf16 %v228, %v225
      %v283 = vpack.c.bf16 %v234, %v231
      %v284 = vpack.c.bf16 %v240, %v237
      %v285 = vpack.c.bf16 %v274, %v273
      %v286 = vpack.c.bf16 %v276, %v275
      %v287 = vpack.c.bf16 %v278, %v277
      %v288 = vpack.c.bf16 %v280, %v279
      %v289 = vld [vmem:[#allocation7] sm:$0xf]
      %v290 = vld [vmem:[#allocation7 + $0x10] sm:$0xf]
      %v291 = vld [vmem:[#allocation7 + $0x20] sm:$0xf]
      %v292 = vld [vmem:[#allocation7 + $0x30] sm:$0xf]
      %v293 = vld [vmem:[#allocation9] sm:$0xf]
      %v294 = vld [vmem:[#allocation9 + $0x10] sm:$0xf]
      %v295 = vld [vmem:[#allocation9 + $0x20] sm:$0xf]
      %v296 = vld [vmem:[#allocation9 + $0x30] sm:$0xf]
      %v301 = vunpack.c.l.b16 %v285
      %v302 = vunpack.c.h.b16 %v285
      %v303 = vunpack.c.l.b16 %v286
      %v304 = vunpack.c.h.b16 %v286
      %v305 = vunpack.c.l.b16 %v287
      %v306 = vunpack.c.h.b16 %v287
      %v307 = vunpack.c.l.b16 %v288
      %v308 = vunpack.c.h.b16 %v288
      %v309 = vlaneseq
      %v310 = vand.u32 %v309, 127
      %v311 = vlaneseq
      %v312 = vshrl.u32 %v311, 7
      %v313 = vsub.s32 %v310, %v312
      %v314 = vrot.slane %v301, %v313
      %v315 = vadd.s32 %v310, 4294967288
      %v316 = vlaneseq
      %v317 = vshrl.u32 %v316, 7
      %v318 = vsub.s32 %v315, %v317
      %v319 = vrot.slane %v302, %v318
      %vm320 = vcmask 130112
      %v321 = vsel %vm320, %v319, %v314
      %v322 = vadd.s32 %v310, 4294967280
      %v323 = vlaneseq
      %v324 = vshrl.u32 %v323, 7
      %v325 = vsub.s32 %v322, %v324
      %v326 = vrot.slane %v303, %v325
      %vm327 = vcmask 195712
      %v328 = vsel %vm327, %v326, %v321
      %v329 = vadd.s32 %v310, 4294967272
      %v330 = vlaneseq
      %v331 = vshrl.u32 %v330, 7
      %v332 = vsub.s32 %v329, %v331
      %v333 = vrot.slane %v304, %v332
      %vm334 = vcmask 261312
      %v335 = vsel %vm334, %v333, %v328
      %v336 = vlaneseq
      %v337 = vshrl.u32 %v336, 7
      %v338 = vsub.s32 %v310, %v337
      %v339 = vrot.slane %v305, %v338
      %v340 = vlaneseq
      %v341 = vshrl.u32 %v340, 7
      %v342 = vsub.s32 %v315, %v341
      %v343 = vrot.slane %v306, %v342
      %v344 = vsel %vm320, %v343, %v339
      %v345 = vlaneseq
      %v346 = vshrl.u32 %v345, 7
      %v347 = vsub.s32 %v322, %v346
      %v348 = vrot.slane %v307, %v347
      %v349 = vsel %vm327, %v348, %v344
      %v350 = vlaneseq
      %v351 = vshrl.u32 %v350, 7
      %v352 = vsub.s32 %v329, %v351
      %v353 = vrot.slane %v308, %v352
      %v354 = vsel %vm334, %v353, %v349
      %vm355 = vcmask 1041409
      %v356 = vsel %vm355, %v354, %v335
      %v357 = vpack.c.b16 %v356, %v356
      %v362 = vunpack.c.l.b16 %v293
      %v363 = vunpack.c.l.b16 %v294
      %v364 = vunpack.c.l.b16 %v295
      %v365 = vunpack.c.l.b16 %v296
      %v366 = vpack.c.b16 %v363, %v362
      %v367 = vpack.c.b16 %v365, %v364
      %vm370 = vcmask 261120
      %v372 = vsel %vm370, %v357, 0
      %374 = vmatprep.subr.bf16.mxu0 0
      %375 = vmatpush1.bf16.msra.mxu0 0
      %376 = vmatprep.subr.bf16.mxu0 0
      %377 = vmatpush1.bf16.msra.mxu0 0
      %378 = vmatprep.subr.bf16.mxu0 0
      %379 = vmatpush1.bf16.msra.mxu0 0
      %380 = vmatprep.subr.bf16.mxu0 0
      %381 = vmatpush1.bf16.msra.mxu0 0
      %382 = vmatprep.subr.bf16.mxu0 0
      %383 = vmatpush1.bf16.msra.mxu0 0
      %384 = vmatprep.subr.bf16.mxu0 0
      %385 = vmatpush1.bf16.msra.mxu0 0
      %386 = vmatprep.subr.bf16.mxu0 0
      %387 = vmatpush1.bf16.msra.mxu0 %v367
      %388 = vmatprep.subr.bf16.mxu0 0
      %389 = vmatpush1.bf16.msra.mxu0 %v366
      %390 = vmatprep.subr.bf16.mxu0 0
      %391 = vmatpush2.bf16.msra.mxu0 0
      %392 = vmatprep.subr.bf16.mxu0 0
      %393 = vmatpush2.bf16.msra.mxu0 0
      %394 = vmatprep.subr.bf16.mxu0 0
      %395 = vmatpush2.bf16.msra.mxu0 0
      %396 = vmatprep.subr.bf16.mxu0 0
      %397 = vmatpush2.bf16.msra.mxu0 0
      %398 = vmatprep.subr.bf16.mxu0 0
      %399 = vmatpush2.bf16.msra.mxu0 0
      %400 = vmatprep.subr.bf16.mxu0 0
      %401 = vmatpush2.bf16.msra.mxu0 0
      %402 = vmatprep.subr.bf16.mxu0 0
      %403 = vmatpush2.bf16.msra.mxu0 0
      %404 = vmatprep.subr.bf16.mxu0 0
      %405 = vmatpush2.bf16.msra.mxu0 0
      %406 = vmatprep.mubr.bf16.mxu0 0
      %407 = vmatmul.mubr.bf16.gmra.mxu0 %v372
      %v408 = vpop.f32.mrf.mxu0
      %v409 = vadd.f32 0.0, %v408
      %v410 = vpop.f32.mrf.mxu0
      %v411 = vpop.f32.mrf.mxu0
      %v412 = vpop.f32.mrf.mxu0
      %413 = vdwg.mxu0
      %v418 = vunpack.c.l.b16 %v281
      %v419 = vunpack.c.h.b16 %v281
      %v420 = vunpack.c.l.b16 %v282
      %v421 = vunpack.c.h.b16 %v282
      %v422 = vunpack.c.l.b16 %v283
      %v423 = vunpack.c.h.b16 %v283
      %v424 = vunpack.c.l.b16 %v284
      %v425 = vunpack.c.h.b16 %v284
      %v426 = vlaneseq
      %v427 = vshrl.u32 %v426, 7
      %v428 = vsub.s32 %v310, %v427
      %v429 = vrot.slane %v418, %v428
      %v430 = vlaneseq
      %v431 = vshrl.u32 %v430, 7
      %v432 = vsub.s32 %v315, %v431
      %v433 = vrot.slane %v419, %v432
      %v434 = vsel %vm320, %v433, %v429
      %v435 = vlaneseq
      %v436 = vshrl.u32 %v435, 7
      %v437 = vsub.s32 %v322, %v436
      %v438 = vrot.slane %v420, %v437
      %v439 = vsel %vm327, %v438, %v434
      %v440 = vlaneseq
      %v441 = vshrl.u32 %v440, 7
      %v442 = vsub.s32 %v329, %v441
      %v443 = vrot.slane %v421, %v442
      %v444 = vsel %vm334, %v443, %v439
      %v445 = vlaneseq
      %v446 = vshrl.u32 %v445, 7
      %v447 = vsub.s32 %v310, %v446
      %v448 = vrot.slane %v422, %v447
      %v449 = vlaneseq
      %v450 = vshrl.u32 %v449, 7
      %v451 = vsub.s32 %v315, %v450
      %v452 = vrot.slane %v423, %v451
      %v453 = vsel %vm320, %v452, %v448
      %v454 = vlaneseq
      %v455 = vshrl.u32 %v454, 7
      %v456 = vsub.s32 %v322, %v455
      %v457 = vrot.slane %v424, %v456
      %v458 = vsel %vm327, %v457, %v453
      %v459 = vlaneseq
      %v460 = vshrl.u32 %v459, 7
      %v461 = vsub.s32 %v329, %v460
      %v462 = vrot.slane %v425, %v461
      %v463 = vsel %vm334, %v462, %v458
      %v464 = vsel %vm355, %v463, %v444
      %v465 = vpack.c.b16 %v464, %v464
      %v470 = vunpack.c.l.b16 %v289
      %v471 = vunpack.c.l.b16 %v290
      %v472 = vunpack.c.l.b16 %v291
      %v473 = vunpack.c.l.b16 %v292
      %v474 = vpack.c.b16 %v471, %v470
      %v475 = vpack.c.b16 %v473, %v472
      %v479 = vsel %vm370, %v465, 0
      %481 = vmatprep.subr.bf16.mxu0 0
      %482 = vmatpush1.bf16.msra.mxu0 0
      %483 = vmatprep.subr.bf16.mxu0 0
      %484 = vmatpush1.bf16.msra.mxu0 0
      %485 = vmatprep.subr.bf16.mxu0 0
      %486 = vmatpush1.bf16.msra.mxu0 0
      %487 = vmatprep.subr.bf16.mxu0 0
      %488 = vmatpush1.bf16.msra.mxu0 0
      %489 = vmatprep.subr.bf16.mxu0 0
      %490 = vmatpush1.bf16.msra.mxu0 0
      %491 = vmatprep.subr.bf16.mxu0 0
      %492 = vmatpush1.bf16.msra.mxu0 0
      %493 = vmatprep.subr.bf16.mxu0 0
      %494 = vmatpush1.bf16.msra.mxu0 %v475
      %495 = vmatprep.subr.bf16.mxu0 0
      %496 = vmatpush1.bf16.msra.mxu0 %v474
      %497 = vmatprep.subr.bf16.mxu0 0
      %498 = vmatpush2.bf16.msra.mxu0 0
      %499 = vmatprep.subr.bf16.mxu0 0
      %500 = vmatpush2.bf16.msra.mxu0 0
      %501 = vmatprep.subr.bf16.mxu0 0
      %502 = vmatpush2.bf16.msra.mxu0 0
      %503 = vmatprep.subr.bf16.mxu0 0
      %504 = vmatpush2.bf16.msra.mxu0 0
      %505 = vmatprep.subr.bf16.mxu0 0
      %506 = vmatpush2.bf16.msra.mxu0 0
      %507 = vmatprep.subr.bf16.mxu0 0
      %508 = vmatpush2.bf16.msra.mxu0 0
      %509 = vmatprep.subr.bf16.mxu0 0
      %510 = vmatpush2.bf16.msra.mxu0 0
      %511 = vmatprep.subr.bf16.mxu0 0
      %512 = vmatpush2.bf16.msra.mxu0 0
      %513 = vmatprep.mubr.bf16.mxu0 0
      %514 = vmatmul.mubr.bf16.gmra.mxu0 %v479
      %v515 = vpop.f32.mrf.mxu0
      %v516 = vadd.f32 %v409, %v515
      %v517 = vpop.f32.mrf.mxu0
      %v518 = vpop.f32.mrf.mxu0
      %v519 = vpop.f32.mrf.mxu0
      %520 = vdwg.mxu0
      %v521 = vld [vmem:[%s3] sm:$0x1]
      %v523 = vlaneseq
      %v524 = vshrl.u32 %v523, 7
      %v525 = vsub.s32 0, %v524
      %v526 = vrot.slane %v521, %v525
      %v528 = vmul.f32 %v516, %v526
      %v529 = vld [vmem:[#allocation10] sm:$0x1]
      %v531 = vlaneseq
      %v532 = vshrl.u32 %v531, 7
      %v533 = vsub.s32 0, %v532
      %v534 = vrot.slane %v529, %v533
      %v536 = vadd.f32 %v528, %v534
      %vm537 = vcmp.gt.f32.partialorder %v536, 0.0
      %v538 = vmul.f32 %v536, 0.2
      %v539 = vsel %vm537, %v536, %v538
      %v540 = vpack.c.bf16 %v539, %v539
      %v541 = vld [vmem:[#allocation12] sm:$0xff]
      %v542 = vld [vmem:[#allocation12 + $0x8] sm:$0xff]
      %v543 = vld [vmem:[#allocation12 + $0x10] sm:$0xff]
      %v544 = vld [vmem:[#allocation12 + $0x18] sm:$0xff]
      %v545 = vld [vmem:[#allocation12 + $0x20] sm:$0xff]
      %v546 = vld [vmem:[#allocation12 + $0x28] sm:$0xff]
      %v547 = vld [vmem:[#allocation12 + $0x30] sm:$0xff]
      %v548 = vld [vmem:[#allocation12 + $0x38] sm:$0xff]
      %v549 = vld [vmem:[#allocation12 + $0x40] sm:$0xff]
      %v550 = vld [vmem:[#allocation12 + $0x48] sm:$0xff]
      %v551 = vld [vmem:[#allocation12 + $0x50] sm:$0xff]
      %v552 = vld [vmem:[#allocation12 + $0x58] sm:$0xff]
      %v553 = vld [vmem:[#allocation12 + $0x60] sm:$0xff]
      %v554 = vld [vmem:[#allocation12 + $0x68] sm:$0xff]
      %v555 = vld [vmem:[#allocation12 + $0x70] sm:$0xff]
      %v556 = vld [vmem:[#allocation12 + $0x78] sm:$0xff]
      %v557 = vld [vmem:[#allocation7 + $0x4] sm:$0xf]
      %v558 = vld [vmem:[#allocation7 + $0x14] sm:$0xf]
      %v559 = vld [vmem:[#allocation7 + $0x24] sm:$0xf]
      %v560 = vld [vmem:[#allocation7 + $0x34] sm:$0xf]
      %v561 = vld [vmem:[#allocation9 + $0x4] sm:$0xf]
      %v562 = vld [vmem:[#allocation9 + $0x14] sm:$0xf]
      %v563 = vld [vmem:[#allocation9 + $0x24] sm:$0xf]
      %v564 = vld [vmem:[#allocation9 + $0x34] sm:$0xf]
      %v569 = vunpack.c.l.b16 %v561
      %v570 = vunpack.c.l.b16 %v562
      %v571 = vunpack.c.l.b16 %v563
      %v572 = vunpack.c.l.b16 %v564
      %v573 = vpack.c.b16 %v570, %v569
      %v574 = vpack.c.b16 %v572, %v571
      %577 = vmatprep.subr.bf16.mxu0 0
      %578 = vmatpush1.bf16.msra.mxu0 0
      %579 = vmatprep.subr.bf16.mxu0 0
      %580 = vmatpush1.bf16.msra.mxu0 0
      %581 = vmatprep.subr.bf16.mxu0 0
      %582 = vmatpush1.bf16.msra.mxu0 0
      %583 = vmatprep.subr.bf16.mxu0 0
      %584 = vmatpush1.bf16.msra.mxu0 0
      %585 = vmatprep.subr.bf16.mxu0 0
      %586 = vmatpush1.bf16.msra.mxu0 0
      %587 = vmatprep.subr.bf16.mxu0 0
      %588 = vmatpush1.bf16.msra.mxu0 0
      %589 = vmatprep.subr.bf16.mxu0 0
      %590 = vmatpush1.bf16.msra.mxu0 %v574
      %591 = vmatprep.subr.bf16.mxu0 0
      %592 = vmatpush1.bf16.msra.mxu0 %v573
      %593 = vmatprep.subr.bf16.mxu0 0
      %594 = vmatpush2.bf16.msra.mxu0 0
      %595 = vmatprep.subr.bf16.mxu0 0
      %596 = vmatpush2.bf16.msra.mxu0 0
      %597 = vmatprep.subr.bf16.mxu0 0
      %598 = vmatpush2.bf16.msra.mxu0 0
      %599 = vmatprep.subr.bf16.mxu0 0
      %600 = vmatpush2.bf16.msra.mxu0 0
      %601 = vmatprep.subr.bf16.mxu0 0
      %602 = vmatpush2.bf16.msra.mxu0 0
      %603 = vmatprep.subr.bf16.mxu0 0
      %604 = vmatpush2.bf16.msra.mxu0 0
      %605 = vmatprep.subr.bf16.mxu0 0
      %606 = vmatpush2.bf16.msra.mxu0 0
      %607 = vmatprep.subr.bf16.mxu0 0
      %608 = vmatpush2.bf16.msra.mxu0 0
      %609 = vmatprep.mubr.bf16.mxu0 0
      %610 = vmatmul.mubr.bf16.gmra.mxu0 %v372
      %v611 = vpop.f32.mrf.mxu0
      %v612 = vadd.f32 0.0, %v611
      %v613 = vpop.f32.mrf.mxu0
      %v614 = vpop.f32.mrf.mxu0
      %v615 = vpop.f32.mrf.mxu0
      %616 = vdwg.mxu0
      %v621 = vunpack.c.l.b16 %v557
      %v622 = vunpack.c.l.b16 %v558
      %v623 = vunpack.c.l.b16 %v559
      %v624 = vunpack.c.l.b16 %v560
      %v625 = vpack.c.b16 %v622, %v621
      %v626 = vpack.c.b16 %v624, %v623
      %629 = vmatprep.subr.bf16.mxu0 0
      %630 = vmatpush1.bf16.msra.mxu0 0
      %631 = vmatprep.subr.bf16.mxu0 0
      %632 = vmatpush1.bf16.msra.mxu0 0
      %633 = vmatprep.subr.bf16.mxu0 0
      %634 = vmatpush1.bf16.msra.mxu0 0
      %635 = vmatprep.subr.bf16.mxu0 0
      %636 = vmatpush1.bf16.msra.mxu0 0
      %637 = vmatprep.subr.bf16.mxu0 0
      %638 = vmatpush1.bf16.msra.mxu0 0
      %639 = vmatprep.subr.bf16.mxu0 0
      %640 = vmatpush1.bf16.msra.mxu0 0
      %641 = vmatprep.subr.bf16.mxu0 0
      %642 = vmatpush1.bf16.msra.mxu0 %v626
      %643 = vmatprep.subr.bf16.mxu0 0
      %644 = vmatpush1.bf16.msra.mxu0 %v625
      %645 = vmatprep.subr.bf16.mxu0 0
      %646 = vmatpush2.bf16.msra.mxu0 0
      %647 = vmatprep.subr.bf16.mxu0 0
      %648 = vmatpush2.bf16.msra.mxu0 0
      %649 = vmatprep.subr.bf16.mxu0 0
      %650 = vmatpush2.bf16.msra.mxu0 0
      %651 = vmatprep.subr.bf16.mxu0 0
      %652 = vmatpush2.bf16.msra.mxu0 0
      %653 = vmatprep.subr.bf16.mxu0 0
      %654 = vmatpush2.bf16.msra.mxu0 0
      %655 = vmatprep.subr.bf16.mxu0 0
      %656 = vmatpush2.bf16.msra.mxu0 0
      %657 = vmatprep.subr.bf16.mxu0 0
      %658 = vmatpush2.bf16.msra.mxu0 0
      %659 = vmatprep.subr.bf16.mxu0 0
      %660 = vmatpush2.bf16.msra.mxu0 0
      %661 = vmatprep.mubr.bf16.mxu0 0
      %662 = vmatmul.mubr.bf16.gmra.mxu0 %v479
      %v663 = vpop.f32.mrf.mxu0
      %v664 = vadd.f32 %v612, %v663
      %v665 = vpop.f32.mrf.mxu0
      %v666 = vpop.f32.mrf.mxu0
      %v667 = vpop.f32.mrf.mxu0
      %668 = vdwg.mxu0
      %v669 = vld [vmem:[%s3 + $0x1] sm:$0x1]
      %v671 = vlaneseq
      %v672 = vshrl.u32 %v671, 7
      %v673 = vsub.s32 0, %v672
      %v674 = vrot.slane %v669, %v673
      %v676 = vmul.f32 %v664, %v674
      %v677 = vld [vmem:[#allocation10 + $0x1] sm:$0x1]
      %v679 = vlaneseq
      %v680 = vshrl.u32 %v679, 7
      %v681 = vsub.s32 0, %v680
      %v682 = vrot.slane %v677, %v681
      %v684 = vadd.f32 %v676, %v682
      %vm685 = vcmp.gt.f32.partialorder %v684, 0.0
      %v686 = vmul.f32 %v684, 0.2
      %v687 = vsel %vm685, %v684, %v686
      %v688 = vpack.c.bf16 %v687, %v687
      %v689 = vld [vmem:[#allocation12 + $0x80] sm:$0xff]
      %v690 = vld [vmem:[#allocation12 + $0x88] sm:$0xff]
      %v691 = vld [vmem:[#allocation12 + $0x90] sm:$0xff]
      %v692 = vld [vmem:[#allocation12 + $0x98] sm:$0xff]
      %v693 = vld [vmem:[#allocation12 + $0xa0] sm:$0xff]
      %v694 = vld [vmem:[#allocation12 + $0xa8] sm:$0xff]
      %v695 = vld [vmem:[#allocation12 + $0xb0] sm:$0xff]
      %v696 = vld [vmem:[#allocation12 + $0xb8] sm:$0xff]
      %v697 = vld [vmem:[#allocation12 + $0xc0] sm:$0xff]
      %v698 = vld [vmem:[#allocation12 + $0xc8] sm:$0xff]
      %v699 = vld [vmem:[#allocation12 + $0xd0] sm:$0xff]
      %v700 = vld [vmem:[#allocation12 + $0xd8] sm:$0xff]
      %v701 = vld [vmem:[#allocation12 + $0xe0] sm:$0xff]
      %v702 = vld [vmem:[#allocation12 + $0xe8] sm:$0xff]
      %v703 = vld [vmem:[#allocation12 + $0xf0] sm:$0xff]
      %v704 = vld [vmem:[#allocation12 + $0xf8] sm:$0xff]
      %v721 = vunpack.c.l.b16 %v689
      %v722 = vunpack.c.h.b16 %v689
      %v723 = vunpack.c.l.b16 %v690
      %v724 = vunpack.c.h.b16 %v690
      %v725 = vunpack.c.l.b16 %v691
      %v726 = vunpack.c.h.b16 %v691
      %v727 = vunpack.c.l.b16 %v692
      %v728 = vunpack.c.h.b16 %v692
      %v729 = vunpack.c.l.b16 %v693
      %v730 = vunpack.c.h.b16 %v693
      %v731 = vunpack.c.l.b16 %v694
      %v732 = vunpack.c.h.b16 %v694
      %v733 = vunpack.c.l.b16 %v695
      %v734 = vunpack.c.h.b16 %v695
      %v735 = vunpack.c.l.b16 %v696
      %v736 = vunpack.c.h.b16 %v696
      %v737 = vunpack.c.l.b16 %v697
      %v738 = vunpack.c.h.b16 %v697
      %v739 = vunpack.c.l.b16 %v698
      %v740 = vunpack.c.h.b16 %v698
      %v741 = vunpack.c.l.b16 %v699
      %v742 = vunpack.c.h.b16 %v699
      %v743 = vunpack.c.l.b16 %v700
      %v744 = vunpack.c.h.b16 %v700
      %v745 = vunpack.c.l.b16 %v701
      %v746 = vunpack.c.h.b16 %v701
      %v747 = vunpack.c.l.b16 %v702
      %v748 = vunpack.c.h.b16 %v702
      %v749 = vunpack.c.l.b16 %v703
      %v750 = vunpack.c.h.b16 %v703
      %v751 = vunpack.c.l.b16 %v704
      %v752 = vunpack.c.h.b16 %v704
      %v753 = vpack.c.b16 %v723, %v721
      %v754 = vpack.c.b16 %v724, %v722
      %v755 = vpack.c.b16 %v727, %v725
      %v756 = vpack.c.b16 %v728, %v726
      %v757 = vpack.c.b16 %v731, %v729
      %v758 = vpack.c.b16 %v732, %v730
      %v759 = vpack.c.b16 %v735, %v733
      %v760 = vpack.c.b16 %v736, %v734
      %v761 = vpack.c.b16 %v739, %v737
      %v762 = vpack.c.b16 %v740, %v738
      %v763 = vpack.c.b16 %v743, %v741
      %v764 = vpack.c.b16 %v744, %v742
      %v765 = vpack.c.b16 %v747, %v745
      %v766 = vpack.c.b16 %v748, %v746
      %v767 = vpack.c.b16 %v751, %v749
      %v768 = vpack.c.b16 %v752, %v750
      %785 = vmatprep.subr.bf16.mxu0 %v768
      %786 = vmatpush1.bf16.msra.mxu0 %v767
      %787 = vmatprep.subr.bf16.mxu0 %v766
      %788 = vmatpush1.bf16.msra.mxu0 %v765
      %789 = vmatprep.subr.bf16.mxu0 %v764
      %790 = vmatpush1.bf16.msra.mxu0 %v763
      %791 = vmatprep.subr.bf16.mxu0 %v762
      %792 = vmatpush1.bf16.msra.mxu0 %v761
      %793 = vmatprep.subr.bf16.mxu0 %v760
      %794 = vmatpush1.bf16.msra.mxu0 %v759
      %795 = vmatprep.subr.bf16.mxu0 %v758
      %796 = vmatpush1.bf16.msra.mxu0 %v757
      %797 = vmatprep.subr.bf16.mxu0 %v756
      %798 = vmatpush1.bf16.msra.mxu0 %v755
      %799 = vmatprep.subr.bf16.mxu0 %v754
      %800 = vmatpush1.bf16.msra.mxu0 %v753
      %801 = vmatprep.subr.bf16.mxu0 0
      %802 = vmatpush2.bf16.msra.mxu0 0
      %803 = vmatprep.subr.bf16.mxu0 0
      %804 = vmatpush2.bf16.msra.mxu0 0
      %805 = vmatprep.subr.bf16.mxu0 0
      %806 = vmatpush2.bf16.msra.mxu0 0
      %807 = vmatprep.subr.bf16.mxu0 0
      %808 = vmatpush2.bf16.msra.mxu0 0
      %809 = vmatprep.subr.bf16.mxu0 0
      %810 = vmatpush2.bf16.msra.mxu0 0
      %811 = vmatprep.subr.bf16.mxu0 0
      %812 = vmatpush2.bf16.msra.mxu0 0
      %813 = vmatprep.subr.bf16.mxu0 0
      %814 = vmatpush2.bf16.msra.mxu0 0
      %815 = vmatprep.subr.bf16.mxu0 0
      %816 = vmatpush2.bf16.msra.mxu0 0
      %817 = vmatprep.mubr.bf16.mxu0 0
      %818 = vmatmul.mubr.bf16.gmra.mxu0 %v688
      %v819 = vpop.f32.mrf.mxu0
      %v820 = vadd.f32 0.0, %v819
      %v821 = vpop.f32.mrf.mxu0
      %v822 = vadd.f32 0.0, %v821
      %v823 = vpop.f32.mrf.mxu0
      %v824 = vpop.f32.mrf.mxu0
      %825 = vdwg.mxu0
      %v842 = vunpack.c.l.b16 %v541
      %v843 = vunpack.c.h.b16 %v541
      %v844 = vunpack.c.l.b16 %v542
      %v845 = vunpack.c.h.b16 %v542
      %v846 = vunpack.c.l.b16 %v543
      %v847 = vunpack.c.h.b16 %v543
      %v848 = vunpack.c.l.b16 %v544
      %v849 = vunpack.c.h.b16 %v544
      %v850 = vunpack.c.l.b16 %v545
      %v851 = vunpack.c.h.b16 %v545
      %v852 = vunpack.c.l.b16 %v546
      %v853 = vunpack.c.h.b16 %v546
      %v854 = vunpack.c.l.b16 %v547
      %v855 = vunpack.c.h.b16 %v547
      %v856 = vunpack.c.l.b16 %v548
      %v857 = vunpack.c.h.b16 %v548
      %v858 = vunpack.c.l.b16 %v549
      %v859 = vunpack.c.h.b16 %v549
      %v860 = vunpack.c.l.b16 %v550
      %v861 = vunpack.c.h.b16 %v550
      %v862 = vunpack.c.l.b16 %v551
      %v863 = vunpack.c.h.b16 %v551
      %v864 = vunpack.c.l.b16 %v552
      %v865 = vunpack.c.h.b16 %v552
      %v866 = vunpack.c.l.b16 %v553
      %v867 = vunpack.c.h.b16 %v553
      %v868 = vunpack.c.l.b16 %v554
      %v869 = vunpack.c.h.b16 %v554
      %v870 = vunpack.c.l.b16 %v555
      %v871 = vunpack.c.h.b16 %v555
      %v872 = vunpack.c.l.b16 %v556
      %v873 = vunpack.c.h.b16 %v556
      %v874 = vpack.c.b16 %v844, %v842
      %v875 = vpack.c.b16 %v845, %v843
      %v876 = vpack.c.b16 %v848, %v846
      %v877 = vpack.c.b16 %v849, %v847
      %v878 = vpack.c.b16 %v852, %v850
      %v879 = vpack.c.b16 %v853, %v851
      %v880 = vpack.c.b16 %v856, %v854
      %v881 = vpack.c.b16 %v857, %v855
      %v882 = vpack.c.b16 %v860, %v858
      %v883 = vpack.c.b16 %v861, %v859
      %v884 = vpack.c.b16 %v864, %v862
      %v885 = vpack.c.b16 %v865, %v863
      %v886 = vpack.c.b16 %v868, %v866
      %v887 = vpack.c.b16 %v869, %v867
      %v888 = vpack.c.b16 %v872, %v870
      %v889 = vpack.c.b16 %v873, %v871
      %906 = vmatprep.subr.bf16.mxu0 %v889
      %907 = vmatpush1.bf16.msra.mxu0 %v888
      %908 = vmatprep.subr.bf16.mxu0 %v887
      %909 = vmatpush1.bf16.msra.mxu0 %v886
      %910 = vmatprep.subr.bf16.mxu0 %v885
      %911 = vmatpush1.bf16.msra.mxu0 %v884
      %912 = vmatprep.subr.bf16.mxu0 %v883
      %913 = vmatpush1.bf16.msra.mxu0 %v882
      %914 = vmatprep.subr.bf16.mxu0 %v881
      %915 = vmatpush1.bf16.msra.mxu0 %v880
      %916 = vmatprep.subr.bf16.mxu0 %v879
      %917 = vmatpush1.bf16.msra.mxu0 %v878
      %918 = vmatprep.subr.bf16.mxu0 %v877
      %919 = vmatpush1.bf16.msra.mxu0 %v876
      %920 = vmatprep.subr.bf16.mxu0 %v875
      %921 = vmatpush1.bf16.msra.mxu0 %v874
      %922 = vmatprep.subr.bf16.mxu0 0
      %923 = vmatpush2.bf16.msra.mxu0 0
      %924 = vmatprep.subr.bf16.mxu0 0
      %925 = vmatpush2.bf16.msra.mxu0 0
      %926 = vmatprep.subr.bf16.mxu0 0
      %927 = vmatpush2.bf16.msra.mxu0 0
      %928 = vmatprep.subr.bf16.mxu0 0
      %929 = vmatpush2.bf16.msra.mxu0 0
      %930 = vmatprep.subr.bf16.mxu0 0
      %931 = vmatpush2.bf16.msra.mxu0 0
      %932 = vmatprep.subr.bf16.mxu0 0
      %933 = vmatpush2.bf16.msra.mxu0 0
      %934 = vmatprep.subr.bf16.mxu0 0
      %935 = vmatpush2.bf16.msra.mxu0 0
      %936 = vmatprep.subr.bf16.mxu0 0
      %937 = vmatpush2.bf16.msra.mxu0 0
      %938 = vmatprep.mubr.bf16.mxu0 0
      %939 = vmatmul.mubr.bf16.gmra.mxu0 %v540
      %v940 = vpop.f32.mrf.mxu0
      %v941 = vadd.f32 %v820, %v940
      %v942 = vpop.f32.mrf.mxu0
      %v943 = vadd.f32 %v822, %v942
      %v944 = vpop.f32.mrf.mxu0
      %v945 = vpop.f32.mrf.mxu0
      %946 = vdwg.mxu0
      %v947 = vld [vmem:[#allocation7 + $0x8] sm:$0xf]
      %v948 = vld [vmem:[#allocation7 + $0x18] sm:$0xf]
      %v949 = vld [vmem:[#allocation7 + $0x28] sm:$0xf]
      %v950 = vld [vmem:[#allocation7 + $0x38] sm:$0xf]
      %v951 = vld [vmem:[#allocation9 + $0x8] sm:$0xf]
      %v952 = vld [vmem:[#allocation9 + $0x18] sm:$0xf]
      %v953 = vld [vmem:[#allocation9 + $0x28] sm:$0xf]
      %v954 = vld [vmem:[#allocation9 + $0x38] sm:$0xf]
      %v959 = vunpack.c.l.b16 %v951
      %v960 = vunpack.c.l.b16 %v952
      %v961 = vunpack.c.l.b16 %v953
      %v962 = vunpack.c.l.b16 %v954
      %v963 = vpack.c.b16 %v960, %v959
      %v964 = vpack.c.b16 %v962, %v961
      %967 = vmatprep.subr.bf16.mxu0 0
      %968 = vmatpush1.bf16.msra.mxu0 0
      %969 = vmatprep.subr.bf16.mxu0 0
      %970 = vmatpush1.bf16.msra.mxu0 0
      %971 = vmatprep.subr.bf16.mxu0 0
      %972 = vmatpush1.bf16.msra.mxu0 0
      %973 = vmatprep.subr.bf16.mxu0 0
      %974 = vmatpush1.bf16.msra.mxu0 0
      %975 = vmatprep.subr.bf16.mxu0 0
      %976 = vmatpush1.bf16.msra.mxu0 0
      %977 = vmatprep.subr.bf16.mxu0 0
      %978 = vmatpush1.bf16.msra.mxu0 0
      %979 = vmatprep.subr.bf16.mxu0 0
      %980 = vmatpush1.bf16.msra.mxu0 %v964
      %981 = vmatprep.subr.bf16.mxu0 0
      %982 = vmatpush1.bf16.msra.mxu0 %v963
      %983 = vmatprep.subr.bf16.mxu0 0
      %984 = vmatpush2.bf16.msra.mxu0 0
      %985 = vmatprep.subr.bf16.mxu0 0
      %986 = vmatpush2.bf16.msra.mxu0 0
      %987 = vmatprep.subr.bf16.mxu0 0
      %988 = vmatpush2.bf16.msra.mxu0 0
      %989 = vmatprep.subr.bf16.mxu0 0
      %990 = vmatpush2.bf16.msra.mxu0 0
      %991 = vmatprep.subr.bf16.mxu0 0
      %992 = vmatpush2.bf16.msra.mxu0 0
      %993 = vmatprep.subr.bf16.mxu0 0
      %994 = vmatpush2.bf16.msra.mxu0 0
      %995 = vmatprep.subr.bf16.mxu0 0
      %996 = vmatpush2.bf16.msra.mxu0 0
      %997 = vmatprep.subr.bf16.mxu0 0
      %998 = vmatpush2.bf16.msra.mxu0 0
      %999 = vmatprep.mubr.bf16.mxu0 0
      %1000 = vmatmul.mubr.bf16.gmra.mxu0 %v372
      %v1001 = vpop.f32.mrf.mxu0
      %v1002 = vadd.f32 0.0, %v1001
      %v1003 = vpop.f32.mrf.mxu0
      %v1004 = vpop.f32.mrf.mxu0
      %v1005 = vpop.f32.mrf.mxu0
      %1006 = vdwg.mxu0
      %v1011 = vunpack.c.l.b16 %v947
      %v1012 = vunpack.c.l.b16 %v948
      %v1013 = vunpack.c.l.b16 %v949
      %v1014 = vunpack.c.l.b16 %v950
      %v1015 = vpack.c.b16 %v1012, %v1011
      %v1016 = vpack.c.b16 %v1014, %v1013
      %1019 = vmatprep.subr.bf16.mxu0 0
      %1020 = vmatpush1.bf16.msra.mxu0 0
      %1021 = vmatprep.subr.bf16.mxu0 0
      %1022 = vmatpush1.bf16.msra.mxu0 0
      %1023 = vmatprep.subr.bf16.mxu0 0
      %1024 = vmatpush1.bf16.msra.mxu0 0
      %1025 = vmatprep.subr.bf16.mxu0 0
      %1026 = vmatpush1.bf16.msra.mxu0 0
      %1027 = vmatprep.subr.bf16.mxu0 0
      %1028 = vmatpush1.bf16.msra.mxu0 0
      %1029 = vmatprep.subr.bf16.mxu0 0
      %1030 = vmatpush1.bf16.msra.mxu0 0
      %1031 = vmatprep.subr.bf16.mxu0 0
      %1032 = vmatpush1.bf16.msra.mxu0 %v1016
      %1033 = vmatprep.subr.bf16.mxu0 0
      %1034 = vmatpush1.bf16.msra.mxu0 %v1015
      %1035 = vmatprep.subr.bf16.mxu0 0
      %1036 = vmatpush2.bf16.msra.mxu0 0
      %1037 = vmatprep.subr.bf16.mxu0 0
      %1038 = vmatpush2.bf16.msra.mxu0 0
      %1039 = vmatprep.subr.bf16.mxu0 0
      %1040 = vmatpush2.bf16.msra.mxu0 0
      %1041 = vmatprep.subr.bf16.mxu0 0
      %1042 = vmatpush2.bf16.msra.mxu0 0
      %1043 = vmatprep.subr.bf16.mxu0 0
      %1044 = vmatpush2.bf16.msra.mxu0 0
      %1045 = vmatprep.subr.bf16.mxu0 0
      %1046 = vmatpush2.bf16.msra.mxu0 0
      %1047 = vmatprep.subr.bf16.mxu0 0
      %1048 = vmatpush2.bf16.msra.mxu0 0
      %1049 = vmatprep.subr.bf16.mxu0 0
      %1050 = vmatpush2.bf16.msra.mxu0 0
      %1051 = vmatprep.mubr.bf16.mxu0 0
      %1052 = vmatmul.mubr.bf16.gmra.mxu0 %v479
      %v1053 = vpop.f32.mrf.mxu0
      %v1054 = vadd.f32 %v1002, %v1053
      %v1055 = vpop.f32.mrf.mxu0
      %v1056 = vpop.f32.mrf.mxu0
      %v1057 = vpop.f32.mrf.mxu0
      %1058 = vdwg.mxu0
      %v1059 = vld [vmem:[%s3 + $0x2] sm:$0x1]
      %v1061 = vlaneseq
      %v1062 = vshrl.u32 %v1061, 7
      %v1063 = vsub.s32 0, %v1062
      %v1064 = vrot.slane %v1059, %v1063
      %v1066 = vmul.f32 %v1054, %v1064
      %v1067 = vld [vmem:[#allocation10 + $0x2] sm:$0x1]
      %v1069 = vlaneseq
      %v1070 = vshrl.u32 %v1069, 7
      %v1071 = vsub.s32 0, %v1070
      %v1072 = vrot.slane %v1067, %v1071
      %v1074 = vadd.f32 %v1066, %v1072
      %vm1075 = vcmp.gt.f32.partialorder %v1074, 0.0
      %v1076 = vmul.f32 %v1074, 0.2
      %v1077 = vsel %vm1075, %v1074, %v1076
      %v1078 = vpack.c.bf16 %v1077, %v1077
      %v1079 = vld [vmem:[#allocation12 + $0x100] sm:$0xff]
      %v1080 = vld [vmem:[#allocation12 + $0x108] sm:$0xff]
      %v1081 = vld [vmem:[#allocation12 + $0x110] sm:$0xff]
      %v1082 = vld [vmem:[#allocation12 + $0x118] sm:$0xff]
      %v1083 = vld [vmem:[#allocation12 + $0x120] sm:$0xff]
      %v1084 = vld [vmem:[#allocation12 + $0x128] sm:$0xff]
      %v1085 = vld [vmem:[#allocation12 + $0x130] sm:$0xff]
      %v1086 = vld [vmem:[#allocation12 + $0x138] sm:$0xff]
      %v1087 = vld [vmem:[#allocation12 + $0x140] sm:$0xff]
      %v1088 = vld [vmem:[#allocation12 + $0x148] sm:$0xff]
      %v1089 = vld [vmem:[#allocation12 + $0x150] sm:$0xff]
      %v1090 = vld [vmem:[#allocation12 + $0x158] sm:$0xff]
      %v1091 = vld [vmem:[#allocation12 + $0x160] sm:$0xff]
      %v1092 = vld [vmem:[#allocation12 + $0x168] sm:$0xff]
      %v1093 = vld [vmem:[#allocation12 + $0x170] sm:$0xff]
      %v1094 = vld [vmem:[#allocation12 + $0x178] sm:$0xff]
      %v1111 = vunpack.c.l.b16 %v1079
      %v1112 = vunpack.c.h.b16 %v1079
      %v1113 = vunpack.c.l.b16 %v1080
      %v1114 = vunpack.c.h.b16 %v1080
      %v1115 = vunpack.c.l.b16 %v1081
      %v1116 = vunpack.c.h.b16 %v1081
      %v1117 = vunpack.c.l.b16 %v1082
      %v1118 = vunpack.c.h.b16 %v1082
      %v1119 = vunpack.c.l.b16 %v1083
      %v1120 = vunpack.c.h.b16 %v1083
      %v1121 = vunpack.c.l.b16 %v1084
      %v1122 = vunpack.c.h.b16 %v1084
      %v1123 = vunpack.c.l.b16 %v1085
      %v1124 = vunpack.c.h.b16 %v1085
      %v1125 = vunpack.c.l.b16 %v1086
      %v1126 = vunpack.c.h.b16 %v1086
      %v1127 = vunpack.c.l.b16 %v1087
      %v1128 = vunpack.c.h.b16 %v1087
      %v1129 = vunpack.c.l.b16 %v1088
      %v1130 = vunpack.c.h.b16 %v1088
      %v1131 = vunpack.c.l.b16 %v1089
      %v1132 = vunpack.c.h.b16 %v1089
      %v1133 = vunpack.c.l.b16 %v1090
      %v1134 = vunpack.c.h.b16 %v1090
      %v1135 = vunpack.c.l.b16 %v1091
      %v1136 = vunpack.c.h.b16 %v1091
      %v1137 = vunpack.c.l.b16 %v1092
      %v1138 = vunpack.c.h.b16 %v1092
      %v1139 = vunpack.c.l.b16 %v1093
      %v1140 = vunpack.c.h.b16 %v1093
      %v1141 = vunpack.c.l.b16 %v1094
      %v1142 = vunpack.c.h.b16 %v1094
      %v1143 = vpack.c.b16 %v1113, %v1111
      %v1144 = vpack.c.b16 %v1114, %v1112
      %v1145 = vpack.c.b16 %v1117, %v1115
      %v1146 = vpack.c.b16 %v1118, %v1116
      %v1147 = vpack.c.b16 %v1121, %v1119
      %v1148 = vpack.c.b16 %v1122, %v1120
      %v1149 = vpack.c.b16 %v1125, %v1123
      %v1150 = vpack.c.b16 %v1126, %v1124
      %v1151 = vpack.c.b16 %v1129, %v1127
      %v1152 = vpack.c.b16 %v1130, %v1128
      %v1153 = vpack.c.b16 %v1133, %v1131
      %v1154 = vpack.c.b16 %v1134, %v1132
      %v1155 = vpack.c.b16 %v1137, %v1135
      %v1156 = vpack.c.b16 %v1138, %v1136
      %v1157 = vpack.c.b16 %v1141, %v1139
      %v1158 = vpack.c.b16 %v1142, %v1140
      %1175 = vmatprep.subr.bf16.mxu0 %v1158
      %1176 = vmatpush1.bf16.msra.mxu0 %v1157
      %1177 = vmatprep.subr.bf16.mxu0 %v1156
      %1178 = vmatpush1.bf16.msra.mxu0 %v1155
      %1179 = vmatprep.subr.bf16.mxu0 %v1154
      %1180 = vmatpush1.bf16.msra.mxu0 %v1153
      %1181 = vmatprep.subr.bf16.mxu0 %v1152
      %1182 = vmatpush1.bf16.msra.mxu0 %v1151
      %1183 = vmatprep.subr.bf16.mxu0 %v1150
      %1184 = vmatpush1.bf16.msra.mxu0 %v1149
      %1185 = vmatprep.subr.bf16.mxu0 %v1148
      %1186 = vmatpush1.bf16.msra.mxu0 %v1147
      %1187 = vmatprep.subr.bf16.mxu0 %v1146
      %1188 = vmatpush1.bf16.msra.mxu0 %v1145
      %1189 = vmatprep.subr.bf16.mxu0 %v1144
      %1190 = vmatpush1.bf16.msra.mxu0 %v1143
      %1191 = vmatprep.subr.bf16.mxu0 0
      %1192 = vmatpush2.bf16.msra.mxu0 0
      %1193 = vmatprep.subr.bf16.mxu0 0
      %1194 = vmatpush2.bf16.msra.mxu0 0
      %1195 = vmatprep.subr.bf16.mxu0 0
      %1196 = vmatpush2.bf16.msra.mxu0 0
      %1197 = vmatprep.subr.bf16.mxu0 0
      %1198 = vmatpush2.bf16.msra.mxu0 0
      %1199 = vmatprep.subr.bf16.mxu0 0
      %1200 = vmatpush2.bf16.msra.mxu0 0
      %1201 = vmatprep.subr.bf16.mxu0 0
      %1202 = vmatpush2.bf16.msra.mxu0 0
      %1203 = vmatprep.subr.bf16.mxu0 0
      %1204 = vmatpush2.bf16.msra.mxu0 0
      %1205 = vmatprep.subr.bf16.mxu0 0
      %1206 = vmatpush2.bf16.msra.mxu0 0
      %1207 = vmatprep.mubr.bf16.mxu0 0
      %1208 = vmatmul.mubr.bf16.gmra.mxu0 %v1078
      %v1209 = vpop.f32.mrf.mxu0
      %v1210 = vadd.f32 0.0, %v1209
      %v1211 = vpop.f32.mrf.mxu0
      %v1212 = vadd.f32 0.0, %v1211
      %v1213 = vpop.f32.mrf.mxu0
      %v1214 = vpop.f32.mrf.mxu0
      %1215 = vdwg.mxu0
      %v1216 = vadd.f32 %v941, %v1210
      %v1217 = vadd.f32 %v943, %v1212
      %v1218 = vld [vmem:[#allocation7 + $0xc] sm:$0xf]
      %v1219 = vld [vmem:[#allocation7 + $0x1c] sm:$0xf]
      %v1220 = vld [vmem:[#allocation7 + $0x2c] sm:$0xf]
      %v1221 = vld [vmem:[#allocation7 + $0x3c] sm:$0xf]
      %v1222 = vld [vmem:[#allocation9 + $0xc] sm:$0xf]
      %v1223 = vld [vmem:[#allocation9 + $0x1c] sm:$0xf]
      %v1224 = vld [vmem:[#allocation9 + $0x2c] sm:$0xf]
      %v1225 = vld [vmem:[#allocation9 + $0x3c] sm:$0xf]
      %v1230 = vunpack.c.l.b16 %v1222
      %v1231 = vunpack.c.l.b16 %v1223
      %v1232 = vunpack.c.l.b16 %v1224
      %v1233 = vunpack.c.l.b16 %v1225
      %v1234 = vpack.c.b16 %v1231, %v1230
      %v1235 = vpack.c.b16 %v1233, %v1232
      %1238 = vmatprep.subr.bf16.mxu0 0
      %1239 = vmatpush1.bf16.msra.mxu0 0
      %1240 = vmatprep.subr.bf16.mxu0 0
      %1241 = vmatpush1.bf16.msra.mxu0 0
      %1242 = vmatprep.subr.bf16.mxu0 0
      %1243 = vmatpush1.bf16.msra.mxu0 0
      %1244 = vmatprep.subr.bf16.mxu0 0
      %1245 = vmatpush1.bf16.msra.mxu0 0
      %1246 = vmatprep.subr.bf16.mxu0 0
      %1247 = vmatpush1.bf16.msra.mxu0 0
      %1248 = vmatprep.subr.bf16.mxu0 0
      %1249 = vmatpush1.bf16.msra.mxu0 0
      %1250 = vmatprep.subr.bf16.mxu0 0
      %1251 = vmatpush1.bf16.msra.mxu0 %v1235
      %1252 = vmatprep.subr.bf16.mxu0 0
      %1253 = vmatpush1.bf16.msra.mxu0 %v1234
      %1254 = vmatprep.subr.bf16.mxu0 0
      %1255 = vmatpush2.bf16.msra.mxu0 0
      %1256 = vmatprep.subr.bf16.mxu0 0
      %1257 = vmatpush2.bf16.msra.mxu0 0
      %1258 = vmatprep.subr.bf16.mxu0 0
      %1259 = vmatpush2.bf16.msra.mxu0 0
      %1260 = vmatprep.subr.bf16.mxu0 0
      %1261 = vmatpush2.bf16.msra.mxu0 0
      %1262 = vmatprep.subr.bf16.mxu0 0
      %1263 = vmatpush2.bf16.msra.mxu0 0
      %1264 = vmatprep.subr.bf16.mxu0 0
      %1265 = vmatpush2.bf16.msra.mxu0 0
      %1266 = vmatprep.subr.bf16.mxu0 0
      %1267 = vmatpush2.bf16.msra.mxu0 0
      %1268 = vmatprep.subr.bf16.mxu0 0
      %1269 = vmatpush2.bf16.msra.mxu0 0
      %1270 = vmatprep.mubr.bf16.mxu0 0
      %1271 = vmatmul.mubr.bf16.gmra.mxu0 %v372
      %v1272 = vpop.f32.mrf.mxu0
      %v1273 = vadd.f32 0.0, %v1272
      %v1274 = vpop.f32.mrf.mxu0
      %v1275 = vpop.f32.mrf.mxu0
      %v1276 = vpop.f32.mrf.mxu0
      %1277 = vdwg.mxu0
      %v1282 = vunpack.c.l.b16 %v1218
      %v1283 = vunpack.c.l.b16 %v1219
      %v1284 = vunpack.c.l.b16 %v1220
      %v1285 = vunpack.c.l.b16 %v1221
      %v1286 = vpack.c.b16 %v1283, %v1282
      %v1287 = vpack.c.b16 %v1285, %v1284
      %1290 = vmatprep.subr.bf16.mxu0 0
      %1291 = vmatpush1.bf16.msra.mxu0 0
      %1292 = vmatprep.subr.bf16.mxu0 0
      %1293 = vmatpush1.bf16.msra.mxu0 0
      %1294 = vmatprep.subr.bf16.mxu0 0
      %1295 = vmatpush1.bf16.msra.mxu0 0
      %1296 = vmatprep.subr.bf16.mxu0 0
      %1297 = vmatpush1.bf16.msra.mxu0 0
      %1298 = vmatprep.subr.bf16.mxu0 0
      %1299 = vmatpush1.bf16.msra.mxu0 0
      %1300 = vmatprep.subr.bf16.mxu0 0
      %1301 = vmatpush1.bf16.msra.mxu0 0
      %1302 = vmatprep.subr.bf16.mxu0 0
      %1303 = vmatpush1.bf16.msra.mxu0 %v1287
      %1304 = vmatprep.subr.bf16.mxu0 0
      %1305 = vmatpush1.bf16.msra.mxu0 %v1286
      %1306 = vmatprep.subr.bf16.mxu0 0
      %1307 = vmatpush2.bf16.msra.mxu0 0
      %1308 = vmatprep.subr.bf16.mxu0 0
      %1309 = vmatpush2.bf16.msra.mxu0 0
      %1310 = vmatprep.subr.bf16.mxu0 0
      %1311 = vmatpush2.bf16.msra.mxu0 0
      %1312 = vmatprep.subr.bf16.mxu0 0
      %1313 = vmatpush2.bf16.msra.mxu0 0
      %1314 = vmatprep.subr.bf16.mxu0 0
      %1315 = vmatpush2.bf16.msra.mxu0 0
      %1316 = vmatprep.subr.bf16.mxu0 0
      %1317 = vmatpush2.bf16.msra.mxu0 0
      %1318 = vmatprep.subr.bf16.mxu0 0
      %1319 = vmatpush2.bf16.msra.mxu0 0
      %1320 = vmatprep.subr.bf16.mxu0 0
      %1321 = vmatpush2.bf16.msra.mxu0 0
      %1322 = vmatprep.mubr.bf16.mxu0 0
      %1323 = vmatmul.mubr.bf16.gmra.mxu0 %v479
      %v1324 = vpop.f32.mrf.mxu0
      %v1325 = vadd.f32 %v1273, %v1324
      %v1326 = vpop.f32.mrf.mxu0
      %v1327 = vpop.f32.mrf.mxu0
      %v1328 = vpop.f32.mrf.mxu0
      %1329 = vdwg.mxu0
      %v1330 = vld [vmem:[%s3 + $0x3] sm:$0x1]
      %v1332 = vlaneseq
      %v1333 = vshrl.u32 %v1332, 7
      %v1334 = vsub.s32 0, %v1333
      %v1335 = vrot.slane %v1330, %v1334
      %v1337 = vmul.f32 %v1325, %v1335
      %v1338 = vld [vmem:[#allocation10 + $0x3] sm:$0x1]
      %v1340 = vlaneseq
      %v1341 = vshrl.u32 %v1340, 7
      %v1342 = vsub.s32 0, %v1341
      %v1343 = vrot.slane %v1338, %v1342
      %v1345 = vadd.f32 %v1337, %v1343
      %vm1346 = vcmp.gt.f32.partialorder %v1345, 0.0
      %v1347 = vmul.f32 %v1345, 0.2
      %v1348 = vsel %vm1346, %v1345, %v1347
      %v1349 = vpack.c.bf16 %v1348, %v1348
      %v1350 = vld [vmem:[#allocation12 + $0x180] sm:$0xff]
      %v1351 = vld [vmem:[#allocation12 + $0x188] sm:$0xff]
      %v1352 = vld [vmem:[#allocation12 + $0x190] sm:$0xff]
      %v1353 = vld [vmem:[#allocation12 + $0x198] sm:$0xff]
      %v1354 = vld [vmem:[#allocation12 + $0x1a0] sm:$0xff]
      %v1355 = vld [vmem:[#allocation12 + $0x1a8] sm:$0xff]
      %v1356 = vld [vmem:[#allocation12 + $0x1b0] sm:$0xff]
      %v1357 = vld [vmem:[#allocation12 + $0x1b8] sm:$0xff]
      %v1358 = vld [vmem:[#allocation12 + $0x1c0] sm:$0xff]
      %v1359 = vld [vmem:[#allocation12 + $0x1c8] sm:$0xff]
      %v1360 = vld [vmem:[#allocation12 + $0x1d0] sm:$0xff]
      %v1361 = vld [vmem:[#allocation12 + $0x1d8] sm:$0xff]
      %v1362 = vld [vmem:[#allocation12 + $0x1e0] sm:$0xff]
      %v1363 = vld [vmem:[#allocation12 + $0x1e8] sm:$0xff]
      %v1364 = vld [vmem:[#allocation12 + $0x1f0] sm:$0xff]
      %v1365 = vld [vmem:[#allocation12 + $0x1f8] sm:$0xff]
      %v1382 = vunpack.c.l.b16 %v1350
      %v1383 = vunpack.c.h.b16 %v1350
      %v1384 = vunpack.c.l.b16 %v1351
      %v1385 = vunpack.c.h.b16 %v1351
      %v1386 = vunpack.c.l.b16 %v1352
      %v1387 = vunpack.c.h.b16 %v1352
      %v1388 = vunpack.c.l.b16 %v1353
      %v1389 = vunpack.c.h.b16 %v1353
      %v1390 = vunpack.c.l.b16 %v1354
      %v1391 = vunpack.c.h.b16 %v1354
      %v1392 = vunpack.c.l.b16 %v1355
      %v1393 = vunpack.c.h.b16 %v1355
      %v1394 = vunpack.c.l.b16 %v1356
      %v1395 = vunpack.c.h.b16 %v1356
      %v1396 = vunpack.c.l.b16 %v1357
      %v1397 = vunpack.c.h.b16 %v1357
      %v1398 = vunpack.c.l.b16 %v1358
      %v1399 = vunpack.c.h.b16 %v1358
      %v1400 = vunpack.c.l.b16 %v1359
      %v1401 = vunpack.c.h.b16 %v1359
      %v1402 = vunpack.c.l.b16 %v1360
      %v1403 = vunpack.c.h.b16 %v1360
      %v1404 = vunpack.c.l.b16 %v1361
      %v1405 = vunpack.c.h.b16 %v1361
      %v1406 = vunpack.c.l.b16 %v1362
      %v1407 = vunpack.c.h.b16 %v1362
      %v1408 = vunpack.c.l.b16 %v1363
      %v1409 = vunpack.c.h.b16 %v1363
      %v1410 = vunpack.c.l.b16 %v1364
      %v1411 = vunpack.c.h.b16 %v1364
      %v1412 = vunpack.c.l.b16 %v1365
      %v1413 = vunpack.c.h.b16 %v1365
      %v1414 = vpack.c.b16 %v1384, %v1382
      %v1415 = vpack.c.b16 %v1385, %v1383
      %v1416 = vpack.c.b16 %v1388, %v1386
      %v1417 = vpack.c.b16 %v1389, %v1387
      %v1418 = vpack.c.b16 %v1392, %v1390
      %v1419 = vpack.c.b16 %v1393, %v1391
      %v1420 = vpack.c.b16 %v1396, %v1394
      %v1421 = vpack.c.b16 %v1397, %v1395
      %v1422 = vpack.c.b16 %v1400, %v1398
      %v1423 = vpack.c.b16 %v1401, %v1399
      %v1424 = vpack.c.b16 %v1404, %v1402
      %v1425 = vpack.c.b16 %v1405, %v1403
      %v1426 = vpack.c.b16 %v1408, %v1406
      %v1427 = vpack.c.b16 %v1409, %v1407
      %v1428 = vpack.c.b16 %v1412, %v1410
      %v1429 = vpack.c.b16 %v1413, %v1411
      %1446 = vmatprep.subr.bf16.mxu0 %v1429
      %1447 = vmatpush1.bf16.msra.mxu0 %v1428
      %1448 = vmatprep.subr.bf16.mxu0 %v1427
      %1449 = vmatpush1.bf16.msra.mxu0 %v1426
      %1450 = vmatprep.subr.bf16.mxu0 %v1425
      %1451 = vmatpush1.bf16.msra.mxu0 %v1424
      %1452 = vmatprep.subr.bf16.mxu0 %v1423
      %1453 = vmatpush1.bf16.msra.mxu0 %v1422
      %1454 = vmatprep.subr.bf16.mxu0 %v1421
      %1455 = vmatpush1.bf16.msra.mxu0 %v1420
      %1456 = vmatprep.subr.bf16.mxu0 %v1419
      %1457 = vmatpush1.bf16.msra.mxu0 %v1418
      %1458 = vmatprep.subr.bf16.mxu0 %v1417
      %1459 = vmatpush1.bf16.msra.mxu0 %v1416
      %1460 = vmatprep.subr.bf16.mxu0 %v1415
      %1461 = vmatpush1.bf16.msra.mxu0 %v1414
      %1462 = vmatprep.subr.bf16.mxu0 0
      %1463 = vmatpush2.bf16.msra.mxu0 0
      %1464 = vmatprep.subr.bf16.mxu0 0
      %1465 = vmatpush2.bf16.msra.mxu0 0
      %1466 = vmatprep.subr.bf16.mxu0 0
      %1467 = vmatpush2.bf16.msra.mxu0 0
      %1468 = vmatprep.subr.bf16.mxu0 0
      %1469 = vmatpush2.bf16.msra.mxu0 0
      %1470 = vmatprep.subr.bf16.mxu0 0
      %1471 = vmatpush2.bf16.msra.mxu0 0
      %1472 = vmatprep.subr.bf16.mxu0 0
      %1473 = vmatpush2.bf16.msra.mxu0 0
      %1474 = vmatprep.subr.bf16.mxu0 0
      %1475 = vmatpush2.bf16.msra.mxu0 0
      %1476 = vmatprep.subr.bf16.mxu0 0
      %1477 = vmatpush2.bf16.msra.mxu0 0
      %1478 = vmatprep.mubr.bf16.mxu0 0
      %1479 = vmatmul.mubr.bf16.gmra.mxu0 %v1349
      %v1480 = vpop.f32.mrf.mxu0
      %v1481 = vadd.f32 0.0, %v1480
      %v1482 = vpop.f32.mrf.mxu0
      %v1483 = vadd.f32 0.0, %v1482
      %v1484 = vpop.f32.mrf.mxu0
      %v1485 = vpop.f32.mrf.mxu0
      %1486 = vdwg.mxu0
      %v1487 = vadd.f32 %v1216, %v1481
      %v1488 = vadd.f32 %v1217, %v1483
      %v1489 = vld [vmem:[%s6] sm:$0x3]
      %v1491 = vlaneseq
      %v1492 = vshrl.u32 %v1491, 7
      %v1493 = vsub.s32 0, %v1492
      %v1494 = vrot.slane %v1489, %v1493
      %v1495 = vlaneseq
      %v1496 = vshrl.u32 %v1495, 7
      %v1497 = vsub.s32 1, %v1496
      %v1498 = vrot.slane %v1489, %v1497
      %v1501 = vadd.f32 %v1487, %v1494
      %v1502 = vadd.f32 %v1488, %v1498
      %v1503 = vld [vmem:[%s7] sm:$0x3]
      %v1505 = vlaneseq
      %v1506 = vshrl.u32 %v1505, 7
      %v1507 = vsub.s32 0, %v1506
      %v1508 = vrot.slane %v1503, %v1507
      %v1509 = vlaneseq
      %v1510 = vshrl.u32 %v1509, 7
      %v1511 = vsub.s32 1, %v1510
      %v1512 = vrot.slane %v1503, %v1511
      %v1515 = vmul.f32 %v1501, %v1508
      %v1516 = vmul.f32 %v1502, %v1512
      %v1517 = vld [vmem:[%s8] sm:$0x3]
      %v1519 = vlaneseq
      %v1520 = vshrl.u32 %v1519, 7
      %v1521 = vsub.s32 0, %v1520
      %v1522 = vrot.slane %v1517, %v1521
      %v1523 = vlaneseq
      %v1524 = vshrl.u32 %v1523, 7
      %v1525 = vsub.s32 1, %v1524
      %v1526 = vrot.slane %v1517, %v1525
      %v1529 = vadd.f32 %v1515, %v1522
      %v1530 = vadd.f32 %v1516, %v1526
      %vm1531 = vcmp.gt.f32.partialorder %v1529, 0.0
      %vm1532 = vcmp.gt.f32.partialorder %v1530, 0.0
      %v1533 = vmul.f32 %v1529, 0.2
      %v1534 = vmul.f32 %v1530, 0.2
      %v1535 = vsel %vm1531, %v1529, %v1533
      %v1536 = vsel %vm1532, %v1530, %v1534
      %v1537 = vpack.c.bf16 %v1535, %v1535
      %v1538 = vpack.c.bf16 %v1536, %v1536
      %v1539 = vld [vmem:[#allocation13] sm:$0xf]
      %v1540 = vld [vmem:[#allocation13 + $0x4] sm:$0xf]
      %v1541 = vld [vmem:[#allocation13 + $0x8] sm:$0xf]
      %v1542 = vld [vmem:[#allocation13 + $0xc] sm:$0xf]
      %v1543 = vld [vmem:[#allocation13 + $0x10] sm:$0xf]
      %v1544 = vld [vmem:[#allocation13 + $0x14] sm:$0xf]
      %v1545 = vld [vmem:[#allocation13 + $0x18] sm:$0xf]
      %v1546 = vld [vmem:[#allocation13 + $0x1c] sm:$0xf]
      %v1547 = vld [vmem:[#allocation13 + $0x20] sm:$0xf]
      %v1548 = vld [vmem:[#allocation13 + $0x24] sm:$0xf]
      %v1549 = vld [vmem:[#allocation13 + $0x28] sm:$0xf]
      %v1550 = vld [vmem:[#allocation13 + $0x2c] sm:$0xf]
      %v1551 = vld [vmem:[#allocation13 + $0x30] sm:$0xf]
      %v1552 = vld [vmem:[#allocation13 + $0x34] sm:$0xf]
      %v1553 = vld [vmem:[#allocation13 + $0x38] sm:$0xf]
      %v1554 = vld [vmem:[#allocation13 + $0x3c] sm:$0xf]
      %v1555 = vld [vmem:[#allocation13 + $0x40] sm:$0xf]
      %v1556 = vld [vmem:[#allocation13 + $0x44] sm:$0xf]
      %v1557 = vld [vmem:[#allocation13 + $0x48] sm:$0xf]
      %v1558 = vld [vmem:[#allocation13 + $0x4c] sm:$0xf]
      %v1559 = vld [vmem:[#allocation13 + $0x50] sm:$0xf]
      %v1560 = vld [vmem:[#allocation13 + $0x54] sm:$0xf]
      %v1561 = vld [vmem:[#allocation13 + $0x58] sm:$0xf]
      %v1562 = vld [vmem:[#allocation13 + $0x5c] sm:$0xf]
      %v1563 = vld [vmem:[#allocation13 + $0x60] sm:$0xf]
      %v1564 = vld [vmem:[#allocation13 + $0x64] sm:$0xf]
      %v1565 = vld [vmem:[#allocation13 + $0x68] sm:$0xf]
      %v1566 = vld [vmem:[#allocation13 + $0x6c] sm:$0xf]
      %v1567 = vld [vmem:[#allocation13 + $0x70] sm:$0xf]
      %v1568 = vld [vmem:[#allocation13 + $0x74] sm:$0xf]
      %v1569 = vld [vmem:[#allocation13 + $0x78] sm:$0xf]
      %v1570 = vld [vmem:[#allocation13 + $0x7c] sm:$0xf]
      %v1571 = vld [vmem:[%s10] sm:$0x1]
      %v1573 = vlaneseq
      %v1574 = vshrl.u32 %v1573, 7
      %v1575 = vsub.s32 0, %v1574
      %v1576 = vrot.slane %v1571, %v1575
      %v1610 = vunpack.c.l.b16 %v1539
      %v1611 = vunpack.c.l.b16 %v1540
      %v1612 = vunpack.c.l.b16 %v1541
      %v1613 = vunpack.c.l.b16 %v1542
      %v1614 = vunpack.c.l.b16 %v1543
      %v1615 = vunpack.c.l.b16 %v1544
      %v1616 = vunpack.c.l.b16 %v1545
      %v1617 = vunpack.c.l.b16 %v1546
      %v1618 = vunpack.c.l.b16 %v1547
      %v1619 = vunpack.c.l.b16 %v1548
      %v1620 = vunpack.c.l.b16 %v1549
      %v1621 = vunpack.c.l.b16 %v1550
      %v1622 = vunpack.c.l.b16 %v1551
      %v1623 = vunpack.c.l.b16 %v1552
      %v1624 = vunpack.c.l.b16 %v1553
      %v1625 = vunpack.c.l.b16 %v1554
      %v1626 = vunpack.c.l.b16 %v1555
      %v1627 = vunpack.c.l.b16 %v1556
      %v1628 = vunpack.c.l.b16 %v1557
      %v1629 = vunpack.c.l.b16 %v1558
      %v1630 = vunpack.c.l.b16 %v1559
      %v1631 = vunpack.c.l.b16 %v1560
      %v1632 = vunpack.c.l.b16 %v1561
      %v1633 = vunpack.c.l.b16 %v1562
      %v1634 = vunpack.c.l.b16 %v1563
      %v1635 = vunpack.c.l.b16 %v1564
      %v1636 = vunpack.c.l.b16 %v1565
      %v1637 = vunpack.c.l.b16 %v1566
      %v1638 = vunpack.c.l.b16 %v1567
      %v1639 = vunpack.c.l.b16 %v1568
      %v1640 = vunpack.c.l.b16 %v1569
      %v1641 = vunpack.c.l.b16 %v1570
      %v1642 = vpack.c.b16 %v1611, %v1610
      %v1643 = vpack.c.b16 %v1613, %v1612
      %v1644 = vpack.c.b16 %v1615, %v1614
      %v1645 = vpack.c.b16 %v1617, %v1616
      %v1646 = vpack.c.b16 %v1619, %v1618
      %v1647 = vpack.c.b16 %v1621, %v1620
      %v1648 = vpack.c.b16 %v1623, %v1622
      %v1649 = vpack.c.b16 %v1625, %v1624
      %v1650 = vpack.c.b16 %v1627, %v1626
      %v1651 = vpack.c.b16 %v1629, %v1628
      %v1652 = vpack.c.b16 %v1631, %v1630
      %v1653 = vpack.c.b16 %v1633, %v1632
      %v1654 = vpack.c.b16 %v1635, %v1634
      %v1655 = vpack.c.b16 %v1637, %v1636
      %v1656 = vpack.c.b16 %v1639, %v1638
      %v1657 = vpack.c.b16 %v1641, %v1640
      %1674 = vmatprep.subr.bf16.mxu0 0
      %1675 = vmatpush1.bf16.msra.mxu0 %v1649
      %1676 = vmatprep.subr.bf16.mxu0 0
      %1677 = vmatpush1.bf16.msra.mxu0 %v1648
      %1678 = vmatprep.subr.bf16.mxu0 0
      %1679 = vmatpush1.bf16.msra.mxu0 %v1647
      %1680 = vmatprep.subr.bf16.mxu0 0
      %1681 = vmatpush1.bf16.msra.mxu0 %v1646
      %1682 = vmatprep.subr.bf16.mxu0 0
      %1683 = vmatpush1.bf16.msra.mxu0 %v1645
      %1684 = vmatprep.subr.bf16.mxu0 0
      %1685 = vmatpush1.bf16.msra.mxu0 %v1644
      %1686 = vmatprep.subr.bf16.mxu0 0
      %1687 = vmatpush1.bf16.msra.mxu0 %v1643
      %1688 = vmatprep.subr.bf16.mxu0 0
      %1689 = vmatpush1.bf16.msra.mxu0 %v1642
      %1690 = vmatprep.subr.bf16.mxu0 0
      %1691 = vmatpush2.bf16.msra.mxu0 %v1657
      %1692 = vmatprep.subr.bf16.mxu0 0
      %1693 = vmatpush2.bf16.msra.mxu0 %v1656
      %1694 = vmatprep.subr.bf16.mxu0 0
      %1695 = vmatpush2.bf16.msra.mxu0 %v1655
      %1696 = vmatprep.subr.bf16.mxu0 0
      %1697 = vmatpush2.bf16.msra.mxu0 %v1654
      %1698 = vmatprep.subr.bf16.mxu0 0
      %1699 = vmatpush2.bf16.msra.mxu0 %v1653
      %1700 = vmatprep.subr.bf16.mxu0 0
      %1701 = vmatpush2.bf16.msra.mxu0 %v1652
      %1702 = vmatprep.subr.bf16.mxu0 0
      %1703 = vmatpush2.bf16.msra.mxu0 %v1651
      %1704 = vmatprep.subr.bf16.mxu0 0
      %1705 = vmatpush2.bf16.msra.mxu0 %v1650
      %1706 = vmatprep.mubr.bf16.mxu0 %v1538
      %1707 = vmatmul.mubr.bf16.gmra.mxu0 %v1537
      %v1708 = vpop.f32.mrf.mxu0
      %v1709 = vadd.f32 %v1576, %v1708
      %v1710 = vpop.f32.mrf.mxu0
      %v1711 = vpop.f32.mrf.mxu0
      %v1712 = vpop.f32.mrf.mxu0
      %1713 = vdwg.mxu0
      %1714 = vst [vmem:[#allocation15] sm:$0x3] %v1709
    $region77: #{tpu_custom_call.1} parent=1 // pred_fallthru
      _
    // Predicated region
    $region78: #{tpu_custom_call.1} parent=1 // pred_check
      _
    $region79: #{tpu_custom_call.1} parent=1 // pred_check_branch
      %1716 = sbr.rel (0) target = $region81
    $region80: #{tpu_custom_call.1} parent=1 // pred_region
      %s1718 = ssub.s32 32, 32
      %1719 = vsyncadd [#allocation6], %s1718
      %s1721 = sshll.u32 [#allocation15], 4
      %s1722 = int_to_ptr.vmem [resolvable:$true] %s1721
      %1724 = dma.vmem_to_hbm [thread:$0]  %s1722, 32, %s11, [#allocation6]
    $region81: #{tpu_custom_call.1} parent=1 // pred_fallthru
      _
    // Predicated region
    $region82: #{tpu_custom_call.1} parent=1 // pred_check
      _
    $region83: #{tpu_custom_call.1} parent=1 // pred_check_branch
      %1726 = sbr.rel (0) target = $region85
    $region84: #{tpu_custom_call.1} parent=1 // pred_region
      %1727 = dma.done [#allocation6], 32
    $region85: #{tpu_custom_call.1} parent=1 // pred_fallthru
      _
    %1728 = vsyncpa [#allocation5], 1
    %1729 = vsyncpa [#allocation8], 1
    %1730 = vsyncpa [#allocation11], 1
    %1731 = vsyncpa [#allocation14], 1
    %1732 = vsyncpa [#allocation6], 1

</llo_original>
